<compile_context>
chip_gen: v7x
topology: tpu7x:2x2x1
jax: 0.10.0
libtpu: 0.0.40
codegen_flags: <defaults>
</compile_context>

<pallas_src>
import jax
import jax.numpy as jnp
from jax.experimental import pallas as pl
from jax.experimental.pallas import tpu as pltpu


# ----------------------------------------------------------------------------
# Kernel 1: hoisted simnet input projection  P = tanh(x @ Wi + bi) @ Wih + b
# ----------------------------------------------------------------------------
def _sim_in_proj_kernel(x_ref, wi_ref, bi_ref, wih_ref, brnn_ref, o_ref):
    u = jnp.tanh(
        jnp.dot(x_ref[...], wi_ref[...], preferred_element_type=jnp.float32)
        + bi_ref[...])
    o_ref[...] = (
        jnp.dot(u, wih_ref[...], preferred_element_type=jnp.float32)
        + brnn_ref[...]).astype(o_ref.dtype)


def sim_input_projection(x2d, w_in, b_in, w_ih, b_rnn):
    """x2d: (T*B, F) -> (T*B, H), everything the sim RNN needs per step except
    the recurrent h_prev @ W_hh term."""
    M, F = x2d.shape
    H = w_ih.shape[1]
    return pl.pallas_call(
        _sim_in_proj_kernel,
        out_shape=jax.ShapeDtypeStruct((M, H), x2d.dtype),
        grid=(1,),
        in_specs=[
            pl.BlockSpec((M, F), lambda i: (0, 0)),
            pl.BlockSpec((F, H), lambda i: (0, 0)),
            pl.BlockSpec((1, H), lambda i: (0, 0)),
            pl.BlockSpec((H, H), lambda i: (0, 0)),
            pl.BlockSpec((1, H), lambda i: (0, 0)),
        ],
        out_specs=pl.BlockSpec((M, H), lambda i: (0, 0)),
    )(x2d, w_in, b_in, w_ih, b_rnn)


# ----------------------------------------------------------------------------
# Kernel 2: fused sequential part (sim RNN -> sim out Linear -> cal RNN ->
#           x_len gather -> outlayer), grid iterates over time.
# ----------------------------------------------------------------------------
def _fused_seq_kernel(p_ref, len_ref, w1hh_ref, wcal_ref, bcal_ref, w2hh_ref,
                      wso_ref, bso_ref, wo1_ref, bo1_ref, wo2_ref, bo2_ref,
                      seq_ref, out_ref, h1_ref, h2_ref, g_ref):
    t = pl.program_id(0)
    n_t = pl.num_programs(0)

    @pl.when(t == 0)
    def _():
        h1_ref[...] = jnp.zeros_like(h1_ref)
        h2_ref[...] = jnp.zeros_like(h2_ref)
        g_ref[...] = jnp.zeros_like(g_ref)
        out_ref[...] = jnp.zeros_like(out_ref)

    lens = len_ref[...]                             # (B, 1) int32
    active = t < lens                               # (B, 1) bool: t < x_len[b]

    # --- sim RNN step (input projection precomputed in p_ref) ---
    h1_prev = h1_ref[...]
    h1_new = jnp.tanh(
        p_ref[0]
        + jnp.dot(h1_prev, w1hh_ref[...], preferred_element_type=jnp.float32))
    h1_ref[...] = jnp.where(active, h1_new, h1_prev)   # freeze past length
    sim_out = jnp.where(active, h1_new, 0.0)           # packed-seq output

    # --- simnet output Linear -> `seq` (resident VMEM block, dynamic row) ---
    seq_t = (jnp.dot(sim_out, wso_ref[...], preferred_element_type=jnp.float32)
             + bso_ref[...])
    seq_ref[t] = seq_t.astype(seq_ref.dtype)

    # --- cal RNN step; sim_out Linear folded into its input projection:
    #     seq_t @ Wih[:O] == sim_out @ (Wso @ Wih[:O]) + (bso @ Wih[:O]) ---
    h2_prev = h2_ref[...]
    h2_new = jnp.tanh(
        jnp.dot(sim_out, wcal_ref[...], preferred_element_type=jnp.float32)
        + jnp.dot(h2_prev, w2hh_ref[...], preferred_element_type=jnp.float32)
        + bcal_ref[...])
    h2_ref[...] = jnp.where(active, h2_new, h2_prev)
    o2 = jnp.where(active, h2_new, 0.0)             # pad_packed output (0 past len)

    # --- gather out[b, x_len[b], :]  (diagonal of out[:, x_len]) ---
    # TODO(synk): faithful to PyTorch: pad_packed_sequence zero-pads, so the
    # row at t == x_len[b] is all zeros whenever x_len[b] < T (looks like an
    # upstream quirk but is reproduced here; x_len[b] == T would error
    # upstream, here it leaves the zero-initialized row).
    g_ref[...] = jnp.where(lens == t, o2, g_ref[...])

    # --- outlayer (drop_last is eval-mode Dropout -> identity) ---
    @pl.when(t == n_t - 1)
    def _():
        g = g_ref[...]
        hid = jnp.maximum(
            jnp.dot(g, wo1_ref[...], preferred_element_type=jnp.float32)
            + bo1_ref[...], 0.0)
        out = (jnp.dot(hid, wo2_ref[...], preferred_element_type=jnp.float32)
               + bo2_ref[...])
        out_ref[...] = out.astype(out_ref.dtype)


def fused_sequential(p_seq, x_len_col, w1_hh, w_cal, b_cal, w2_hh,
                     w_so, b_so, w_o1, b_o1, w_o2, b_o2):
    """p_seq: (T, B, H) precomputed sim-RNN input term; returns
    (seq (T,B,O), out (B,L))."""
    T, B, H = p_seq.shape
    O = w_so.shape[1]
    L = w_o2.shape[1]
    return pl.pallas_call(
        _fused_seq_kernel,
        out_shape=(jax.ShapeDtypeStruct((T, B, O), p_seq.dtype),
                   jax.ShapeDtypeStruct((B, L), p_seq.dtype)),
        grid=(T,),
        in_specs=[
            pl.BlockSpec((1, B, H), lambda t: (t, 0, 0)),   # per-step input
            pl.BlockSpec((B, 1), lambda t: (0, 0)),         # x_len (constant)
            pl.BlockSpec((H, H), lambda t: (0, 0)),         # sim W_hh
            pl.BlockSpec((H, H), lambda t: (0, 0)),         # fused cal W_in
            pl.BlockSpec((1, H), lambda t: (0, 0)),         # fused cal b_in
            pl.BlockSpec((H, H), lambda t: (0, 0)),         # cal W_hh
            pl.BlockSpec((H, O), lambda t: (0, 0)),         # sim out W
            pl.BlockSpec((1, O), lambda t: (0, 0)),         # sim out b
            pl.BlockSpec((H, H), lambda t: (0, 0)),         # outlayer W1
            pl.BlockSpec((1, H), lambda t: (0, 0)),         # outlayer b1
            pl.BlockSpec((H, L), lambda t: (0, 0)),         # outlayer W2
            pl.BlockSpec((1, L), lambda t: (0, 0)),         # outlayer b2
        ],
        out_specs=[
            pl.BlockSpec((T, B, O), lambda t: (0, 0, 0)),   # seq, VMEM-resident
            pl.BlockSpec((B, L), lambda t: (0, 0)),         # out, resident
        ],
        scratch_shapes=[
            pltpu.VMEM((B, H), jnp.float32),   # sim RNN hidden
            pltpu.VMEM((B, H), jnp.float32),   # cal RNN hidden
            pltpu.VMEM((B, H), jnp.float32),   # gathered out[b, x_len[b]]
        ],
        compiler_params=pltpu.CompilerParams(
            dimension_semantics=("arbitrary",)),
    )(p_seq, x_len_col, w1_hh, w_cal, b_cal, w2_hh,
      w_so, b_so, w_o1, b_o1, w_o2, b_o2)


# ----------------------------------------------------------------------------
# Parameters
# ----------------------------------------------------------------------------
def init_params(key, input_size, hidden_size, output_size, last_size):
    ks = jax.random.split(key, 12)

    def w(k, shape, scale=0.1):
        return (scale * jax.random.normal(k, shape)).astype(jnp.float32)

    p = {}
    # simnet surrogate (network.MyRNN_skip): input Linear -> tanh RNN -> Linear
    p["sim_in_w"] = w(ks[0], (input_size, hidden_size))
    p["sim_in_b"] = w(ks[1], (1, hidden_size))
    p["sim_rnn_wih"] = w(ks[2], (hidden_size, hidden_size))
    p["sim_rnn_whh"] = w(ks[3], (hidden_size, hidden_size))
    p["sim_rnn_b"] = w(ks[4], (1, hidden_size))
    p["sim_out_w"] = w(ks[5], (hidden_size, output_size))
    p["sim_out_b"] = w(ks[6], (1, output_size))
    # cal rnn: nn.RNN(output_size + 1, hidden_size, 1)
    p["cal_rnn_wih"] = w(ks[7], (output_size + 1, hidden_size))
    p["cal_rnn_whh"] = w(ks[8], (hidden_size, hidden_size))
    p["cal_rnn_b"] = w(ks[9], (1, hidden_size))
    # outlayer: NeuralNet(hidden_size, hidden_size, last_size, 1 layer)
    p["out1_w"] = w(ks[10], (hidden_size, hidden_size))
    p["out1_b"] = jnp.zeros((1, hidden_size), jnp.float32)
    p["out2_w"] = w(ks[11], (hidden_size, last_size))
    p["out2_b"] = jnp.zeros((1, last_size), jnp.float32)
    return p


# ----------------------------------------------------------------------------
# Forward pass of my_network_noskip
# ----------------------------------------------------------------------------
def my_network_noskip_forward(params, x, x_len, y_0, y_1, label=None, p=0.0):
    """x: (B, T, input_size) batch_first, x_len: (B,) int32 valid lengths."""
    B, T, F = x.shape
    H = params["sim_rnn_whh"].shape[0]
    O = params["sim_out_w"].shape[1]

    # --- simnet input side, hoisted off the serial time loop ---
    # TODO(synk): network.MyRNN_skip source is not provided; approximated as
    # input Linear+tanh -> tanh RNN -> output Linear; y_0/y_1/label/p unused.
    x_tbf = jnp.transpose(x, (1, 0, 2))                       # tiny, one-off
    p_seq = sim_input_projection(
        x_tbf.reshape(T * B, F), params["sim_in_w"], params["sim_in_b"],
        params["sim_rnn_wih"], params["sim_rnn_b"]).reshape(T, B, H)

    # Fold the simnet output Linear into the cal-RNN input projection.
    # TODO(synk): the noskip forward feeds `seq` (output_size feats) into an
    # RNN declared with input size output_size+1 (upstream shape quirk); the
    # extra weight row would multiply a zero column and is dropped here.
    w_cal = jnp.dot(params["sim_out_w"], params["cal_rnn_wih"][:O])
    b_cal = (jnp.dot(params["sim_out_b"], params["cal_rnn_wih"][:O])
             + params["cal_rnn_b"])

    x_len_col = x_len.astype(jnp.int32)[:, None]              # (B, 1)

    seq_tbo, out = fused_sequential(
        p_seq, x_len_col, params["sim_rnn_whh"], w_cal, b_cal,
        params["cal_rnn_whh"], params["sim_out_w"], params["sim_out_b"],
        params["out1_w"], params["out1_b"], params["out2_w"], params["out2_b"])

    seq = jnp.transpose(seq_tbo, (1, 0, 2))                   # (B, T, O)
    return seq, out


# ----------------------------------------------------------------------------
if __name__ == "__main__":
    key = jax.random.PRNGKey(0)
    input_size, hidden_size, output_size, last_size = 5, 32, 3, 6
    B, T = 2, 8

    kx, kp = jax.random.split(key)
    x = jax.random.normal(kx, (B, T, input_size), dtype=jnp.float32)
    x_len = jnp.array([6, 4], dtype=jnp.int32)
    y_0 = jnp.zeros((B, output_size), jnp.float32)
    y_1 = jnp.zeros((B, output_size), jnp.float32)

    params = init_params(kp, input_size, hidden_size, output_size, last_size)
    fwd = jax.jit(my_network_noskip_forward)
    seq, out = fwd(params, x, x_len, y_0, y_1)
    jax.block_until_ready((seq, out))

    assert seq.shape == (B, T, output_size)
    assert out.shape == (B, last_size)
    print("KERNEL_OK")
</pallas_src>

<mosaic_0001>
module attributes {stable_mosaic.version = 11 : i64} {
  func.func @_sim_in_proj_kernel(%arg0: i32, %arg1: memref<16x5xf32, #tpu.memory_space<vmem>>, %arg2: memref<5x32xf32, #tpu.memory_space<vmem>>, %arg3: memref<1x32xf32, #tpu.memory_space<vmem>>, %arg4: memref<32x32xf32, #tpu.memory_space<vmem>>, %arg5: memref<1x32xf32, #tpu.memory_space<vmem>>, %arg6: memref<16x32xf32, #tpu.memory_space<vmem>>) attributes {dimension_semantics = [#tpu.dimension_semantics<arbitrary>], iteration_bounds = array<i64: 1>, scalar_prefetch = 0 : i64, scratch_operands = 0 : i64, tpu.core_type = #tpu.core_type<tc>, window_params = [{pipeline_mode = #tpu.pipeline_mode<synchronous>, transform_indices = @transform_0, window_bounds = array<i64: 16, 5>}, {pipeline_mode = #tpu.pipeline_mode<synchronous>, transform_indices = @transform_1, window_bounds = array<i64: 5, 32>}, {pipeline_mode = #tpu.pipeline_mode<synchronous>, transform_indices = @transform_2, window_bounds = array<i64: 1, 32>}, {pipeline_mode = #tpu.pipeline_mode<synchronous>, transform_indices = @transform_3, window_bounds = array<i64: 32, 32>}, {pipeline_mode = #tpu.pipeline_mode<synchronous>, transform_indices = @transform_4, window_bounds = array<i64: 1, 32>}, {pipeline_mode = #tpu.pipeline_mode<synchronous>, transform_indices = @transform_5, window_bounds = array<i64: 16, 32>}]} {
    %c0 = arith.constant 0 : index
    %c0_0 = arith.constant 0 : index
    %0 = vector.load %arg1[%c0, %c0_0] : memref<16x5xf32, #tpu.memory_space<vmem>>, vector<16x5xf32>
    %c0_1 = arith.constant 0 : index
    %c0_2 = arith.constant 0 : index
    %1 = vector.load %arg2[%c0_1, %c0_2] : memref<5x32xf32, #tpu.memory_space<vmem>>, vector<5x32xf32>
    %cst = arith.constant dense<0.000000e+00> : vector<16x32xf32>
    %2 = tpu.matmul %0, %1, %cst {dimension_numbers = #tpu.dot_dimension_numbers<[1], [0], [0], [1], [0, 0, 1, 1], [], []>} : vector<16x5xf32>, vector<5x32xf32>, vector<16x32xf32> -> vector<16x32xf32>
    %c0_3 = arith.constant 0 : index
    %c0_4 = arith.constant 0 : index
    %3 = vector.load %arg3[%c0_3, %c0_4] : memref<1x32xf32, #tpu.memory_space<vmem>>, vector<1x32xf32>
    %4 = vector.broadcast %3 : vector<1x32xf32> to vector<16x32xf32>
    %5 = arith.addf %2, %4 : vector<16x32xf32>
    %6 = math.tanh %5 : vector<16x32xf32>
    %c0_5 = arith.constant 0 : index
    %c0_6 = arith.constant 0 : index
    %7 = vector.load %arg4[%c0_5, %c0_6] : memref<32x32xf32, #tpu.memory_space<vmem>>, vector<32x32xf32>
    %cst_7 = arith.constant dense<0.000000e+00> : vector<16x32xf32>
    %8 = tpu.matmul %6, %7, %cst_7 {dimension_numbers = #tpu.dot_dimension_numbers<[1], [0], [0], [1], [0, 0, 1, 1], [], []>} : vector<16x32xf32>, vector<32x32xf32>, vector<16x32xf32> -> vector<16x32xf32>
    %c0_8 = arith.constant 0 : index
    %c0_9 = arith.constant 0 : index
    %9 = vector.load %arg5[%c0_8, %c0_9] : memref<1x32xf32, #tpu.memory_space<vmem>>, vector<1x32xf32>
    %10 = vector.broadcast %9 : vector<1x32xf32> to vector<16x32xf32>
    %11 = arith.addf %8, %10 : vector<16x32xf32>
    %c0_10 = arith.constant 0 : index
    %c0_11 = arith.constant 0 : index
    %12 = vector.load %arg6[%c0_10, %c0_11] : memref<16x32xf32, #tpu.memory_space<vmem>>, vector<16x32xf32>
    tpu.vector_store %arg6[%c0_10, %c0_11], %11 {strides = array<i32>} : memref<16x32xf32, #tpu.memory_space<vmem>>, vector<16x32xf32>,
    return
  }
  func.func @transform_0(%arg0: i32) -> (i32, i32) {
    %c0_i32 = arith.constant 0 : i32
    %c0_i32_0 = arith.constant 0 : i32
    %c0_i32_1 = arith.constant 0 : i32
    return %c0_i32, %c0_i32_0 : i32, i32
  }
  func.func @transform_1(%arg0: i32) -> (i32, i32) {
    %c0_i32 = arith.constant 0 : i32
    %c0_i32_0 = arith.constant 0 : i32
    %c0_i32_1 = arith.constant 0 : i32
    return %c0_i32, %c0_i32_0 : i32, i32
  }
  func.func @transform_2(%arg0: i32) -> (i32, i32) {
    %c0_i32 = arith.constant 0 : i32
    %c0_i32_0 = arith.constant 0 : i32
    %c0_i32_1 = arith.constant 0 : i32
    return %c0_i32, %c0_i32_0 : i32, i32
  }
  func.func @transform_3(%arg0: i32) -> (i32, i32) {
    %c0_i32 = arith.constant 0 : i32
    %c0_i32_0 = arith.constant 0 : i32
    %c0_i32_1 = arith.constant 0 : i32
    return %c0_i32, %c0_i32_0 : i32, i32
  }
  func.func @transform_4(%arg0: i32) -> (i32, i32) {
    %c0_i32 = arith.constant 0 : i32
    %c0_i32_0 = arith.constant 0 : i32
    %c0_i32_1 = arith.constant 0 : i32
    return %c0_i32, %c0_i32_0 : i32, i32
  }
  func.func @transform_5(%arg0: i32) -> (i32, i32) {
    %c0_i32 = arith.constant 0 : i32
    %c0_i32_0 = arith.constant 0 : i32
    %c0_i32_1 = arith.constant 0 : i32
    return %c0_i32, %c0_i32_0 : i32, i32
  }
}

module attributes {stable_mosaic.version = 11 : i64} {
  func.func @_fused_seq_kernel(%arg0: i32, %arg1: memref<1x2x32xf32, #tpu.memory_space<vmem>>, %arg2: memref<2x1xi32, #tpu.memory_space<vmem>>, %arg3: memref<32x32xf32, #tpu.memory_space<vmem>>, %arg4: memref<32x32xf32, #tpu.memory_space<vmem>>, %arg5: memref<1x32xf32, #tpu.memory_space<vmem>>, %arg6: memref<32x32xf32, #tpu.memory_space<vmem>>, %arg7: memref<32x3xf32, #tpu.memory_space<vmem>>, %arg8: memref<1x3xf32, #tpu.memory_space<vmem>>, %arg9: memref<32x32xf32, #tpu.memory_space<vmem>>, %arg10: memref<1x32xf32, #tpu.memory_space<vmem>>, %arg11: memref<32x6xf32, #tpu.memory_space<vmem>>, %arg12: memref<1x6xf32, #tpu.memory_space<vmem>>, %arg13: memref<8x2x3xf32, #tpu.memory_space<vmem>>, %arg14: memref<2x6xf32, #tpu.memory_space<vmem>>, %arg15: memref<2x32xf32, #tpu.memory_space<vmem>>, %arg16: memref<2x32xf32, #tpu.memory_space<vmem>>, %arg17: memref<2x32xf32, #tpu.memory_space<vmem>>) attributes {dimension_semantics = [#tpu.dimension_semantics<arbitrary>], iteration_bounds = array<i64: 8>, scalar_prefetch = 0 : i64, scratch_operands = 3 : i64, tpu.core_type = #tpu.core_type<tc>, window_params = [{transform_indices = @transform_0, window_bounds = array<i64: 1, 2, 32>}, {pipeline_mode = #tpu.pipeline_mode<synchronous>, transform_indices = @transform_1, window_bounds = array<i64: 2, 1>}, {pipeline_mode = #tpu.pipeline_mode<synchronous>, transform_indices = @transform_2, window_bounds = array<i64: 32, 32>}, {pipeline_mode = #tpu.pipeline_mode<synchronous>, transform_indices = @transform_3, window_bounds = array<i64: 32, 32>}, {pipeline_mode = #tpu.pipeline_mode<synchronous>, transform_indices = @transform_4, window_bounds = array<i64: 1, 32>}, {pipeline_mode = #tpu.pipeline_mode<synchronous>, transform_indices = @transform_5, window_bounds = array<i64: 32, 32>}, {pipeline_mode = #tpu.pipeline_mode<synchronous>, transform_indices = @transform_6, window_bounds = array<i64: 32, 3>}, {pipeline_mode = #tpu.pipeline_mode<synchronous>, transform_indices = @transform_7, window_bounds = array<i64: 1, 3>}, {pipeline_mode = #tpu.pipeline_mode<synchronous>, transform_indices = @transform_8, window_bounds = array<i64: 32, 32>}, {pipeline_mode = #tpu.pipeline_mode<synchronous>, transform_indices = @transform_9, window_bounds = array<i64: 1, 32>}, {pipeline_mode = #tpu.pipeline_mode<synchronous>, transform_indices = @transform_10, window_bounds = array<i64: 32, 6>}, {pipeline_mode = #tpu.pipeline_mode<synchronous>, transform_indices = @transform_11, window_bounds = array<i64: 1, 6>}, {pipeline_mode = #tpu.pipeline_mode<synchronous>, transform_indices = @transform_12, window_bounds = array<i64: 8, 2, 3>}, {pipeline_mode = #tpu.pipeline_mode<synchronous>, transform_indices = @transform_13, window_bounds = array<i64: 2, 6>}]} {
    %c0_i32 = arith.constant 0 : i32
    %0 = arith.cmpi eq, %arg0, %c0_i32 : i32
    %1 = arith.extui %0 : i1 to i32
    %c0_i32_0 = arith.constant 0 : i32
    %2 = arith.cmpi ne, %1, %c0_i32_0 : i32
    scf.if %2 {
      %cst_37 = arith.constant 0.000000e+00 : f32
      %58 = vector.broadcast %cst_37 : f32 to vector<2x32xf32>
      %c0_38 = arith.constant 0 : index
      %c0_39 = arith.constant 0 : index
      %59 = vector.load %arg15[%c0_38, %c0_39] : memref<2x32xf32, #tpu.memory_space<vmem>>, vector<2x32xf32>
      tpu.vector_store %arg15[%c0_38, %c0_39], %58 {strides = array<i32>} : memref<2x32xf32, #tpu.memory_space<vmem>>, vector<2x32xf32>,
      %cst_40 = arith.constant 0.000000e+00 : f32
      %60 = vector.broadcast %cst_40 : f32 to vector<2x32xf32>
      %c0_41 = arith.constant 0 : index
      %c0_42 = arith.constant 0 : index
      %61 = vector.load %arg16[%c0_41, %c0_42] : memref<2x32xf32, #tpu.memory_space<vmem>>, vector<2x32xf32>
      tpu.vector_store %arg16[%c0_41, %c0_42], %60 {strides = array<i32>} : memref<2x32xf32, #tpu.memory_space<vmem>>, vector<2x32xf32>,
      %cst_43 = arith.constant 0.000000e+00 : f32
      %62 = vector.broadcast %cst_43 : f32 to vector<2x32xf32>
      %c0_44 = arith.constant 0 : index
      %c0_45 = arith.constant 0 : index
      %63 = vector.load %arg17[%c0_44, %c0_45] : memref<2x32xf32, #tpu.memory_space<vmem>>, vector<2x32xf32>
      tpu.vector_store %arg17[%c0_44, %c0_45], %62 {strides = array<i32>} : memref<2x32xf32, #tpu.memory_space<vmem>>, vector<2x32xf32>,
      %cst_46 = arith.constant 0.000000e+00 : f32
      %64 = vector.broadcast %cst_46 : f32 to vector<2x6xf32>
      %c0_47 = arith.constant 0 : index
      %c0_48 = arith.constant 0 : index
      %65 = vector.load %arg14[%c0_47, %c0_48] : memref<2x6xf32, #tpu.memory_space<vmem>>, vector<2x6xf32>
      tpu.vector_store %arg14[%c0_47, %c0_48], %64 {strides = array<i32>} : memref<2x6xf32, #tpu.memory_space<vmem>>, vector<2x6xf32>,
    } else {
    }
    %c0 = arith.constant 0 : index
    %c0_1 = arith.constant 0 : index
    %3 = vector.load %arg2[%c0, %c0_1] : memref<2x1xi32, #tpu.memory_space<vmem>>, vector<2x1xi32>
    %4 = vector.broadcast %arg0 : i32 to vector<2x1xi32>
    %5 = arith.cmpi slt, %4, %3 : vector<2x1xi32>
    %c0_2 = arith.constant 0 : index
    %c0_3 = arith.constant 0 : index
    %6 = vector.load %arg15[%c0_2, %c0_3] : memref<2x32xf32, #tpu.memory_space<vmem>>, vector<2x32xf32>
    %c0_4 = arith.constant 0 : index
    %c0_5 = arith.constant 0 : index
    %c0_6 = arith.constant 0 : index
    %7 = vector.load %arg1[%c0_4, %c0_5, %c0_6] : memref<1x2x32xf32, #tpu.memory_space<vmem>>, vector<1x2x32xf32>
    %8 = vector.shape_cast %7 : vector<1x2x32xf32> to vector<2x32xf32>
    %c0_7 = arith.constant 0 : index
    %c0_8 = arith.constant 0 : index
    %9 = vector.load %arg3[%c0_7, %c0_8] : memref<32x32xf32, #tpu.memory_space<vmem>>, vector<32x32xf32>
    %cst = arith.constant dense<0.000000e+00> : vector<2x32xf32>
    %10 = tpu.matmul %6, %9, %cst {dimension_numbers = #tpu.dot_dimension_numbers<[1], [0], [0], [1], [0, 0, 1, 1], [], []>} : vector<2x32xf32>, vector<32x32xf32>, vector<2x32xf32> -> vector<2x32xf32>
    %11 = arith.addf %8, %10 : vector<2x32xf32>
    %12 = math.tanh %11 : vector<2x32xf32>
    %13 = vector.shape_cast %5 : vector<2x1xi1> to vector<2x1xi1>
    %14 = vector.broadcast %13 : vector<2x1xi1> to vector<2x32xi1>
    %15 = arith.select %14, %12, %6 : vector<2x32xi1>, vector<2x32xf32>
    %c0_9 = arith.constant 0 : index
    %c0_10 = arith.constant 0 : index
    %16 = vector.load %arg15[%c0_9, %c0_10] : memref<2x32xf32, #tpu.memory_space<vmem>>, vector<2x32xf32>
    tpu.vector_store %arg15[%c0_9, %c0_10], %15 {strides = array<i32>} : memref<2x32xf32, #tpu.memory_space<vmem>>, vector<2x32xf32>,
    %cst_11 = arith.constant 0.000000e+00 : f32
    %17 = vector.shape_cast %5 : vector<2x1xi1> to vector<2x1xi1>
    %18 = vector.broadcast %17 : vector<2x1xi1> to vector<2x32xi1>
    %19 = vector.broadcast %cst_11 : f32 to vector<2x32xf32>
    %20 = arith.select %18, %12, %19 : vector<2x32xi1>, vector<2x32xf32>
    %c0_12 = arith.constant 0 : index
    %c0_13 = arith.constant 0 : index
    %21 = vector.load %arg7[%c0_12, %c0_13] : memref<32x3xf32, #tpu.memory_space<vmem>>, vector<32x3xf32>
    %cst_14 = arith.constant dense<0.000000e+00> : vector<2x3xf32>
    %22 = tpu.matmul %20, %21, %cst_14 {dimension_numbers = #tpu.dot_dimension_numbers<[1], [0], [0], [1], [0, 0, 1, 1], [], []>} : vector<2x32xf32>, vector<32x3xf32>, vector<2x3xf32> -> vector<2x3xf32>
    %c0_15 = arith.constant 0 : index
    %c0_16 = arith.constant 0 : index
    %23 = vector.load %arg8[%c0_15, %c0_16] : memref<1x3xf32, #tpu.memory_space<vmem>>, vector<1x3xf32>
    %24 = vector.broadcast %23 : vector<1x3xf32> to vector<2x3xf32>
    %25 = arith.addf %22, %24 : vector<2x3xf32>
    %26 = arith.index_cast %arg0 : i32 to index
    %c0_17 = arith.constant 0 : index
    %c0_18 = arith.constant 0 : index
    %27 = vector.load %arg13[%26, %c0_17, %c0_18] : memref<8x2x3xf32, #tpu.memory_space<vmem>>, vector<1x2x3xf32>
    %28 = vector.shape_cast %27 : vector<1x2x3xf32> to vector<2x3xf32>
    %29 = vector.shape_cast %25 : vector<2x3xf32> to vector<1x2x3xf32>
    tpu.vector_store %arg13[%26, %c0_17, %c0_18], %29 {strides = array<i32>} : memref<8x2x3xf32, #tpu.memory_space<vmem>>, vector<1x2x3xf32>,
    %c0_19 = arith.constant 0 : index
    %c0_20 = arith.constant 0 : index
    %30 = vector.load %arg16[%c0_19, %c0_20] : memref<2x32xf32, #tpu.memory_space<vmem>>, vector<2x32xf32>
    %c0_21 = arith.constant 0 : index
    %c0_22 = arith.constant 0 : index
    %31 = vector.load %arg4[%c0_21, %c0_22] : memref<32x32xf32, #tpu.memory_space<vmem>>, vector<32x32xf32>
    %cst_23 = arith.constant dense<0.000000e+00> : vector<2x32xf32>
    %32 = tpu.matmul %20, %31, %cst_23 {dimension_numbers = #tpu.dot_dimension_numbers<[1], [0], [0], [1], [0, 0, 1, 1], [], []>} : vector<2x32xf32>, vector<32x32xf32>, vector<2x32xf32> -> vector<2x32xf32>
    %c0_24 = arith.constant 0 : index
    %c0_25 = arith.constant 0 : index
    %33 = vector.load %arg6[%c0_24, %c0_25] : memref<32x32xf32, #tpu.memory_space<vmem>>, vector<32x32xf32>
    %cst_26 = arith.constant dense<0.000000e+00> : vector<2x32xf32>
    %34 = tpu.matmul %30, %33, %cst_26 {dimension_numbers = #tpu.dot_dimension_numbers<[1], [0], [0], [1], [0, 0, 1, 1], [], []>} : vector<2x32xf32>, vector<32x32xf32>, vector<2x32xf32> -> vector<2x32xf32>
    %35 = arith.addf %32, %34 : vector<2x32xf32>
    %c0_27 = arith.constant 0 : index
    %c0_28 = arith.constant 0 : index
    %36 = vector.load %arg5[%c0_27, %c0_28] : memref<1x32xf32, #tpu.memory_space<vmem>>, vector<1x32xf32>
    %37 = vector.broadcast %36 : vector<1x32xf32> to vector<2x32xf32>
    %38 = arith.addf %35, %37 : vector<2x32xf32>
    %39 = math.tanh %38 : vector<2x32xf32>
    %40 = vector.shape_cast %5 : vector<2x1xi1> to vector<2x1xi1>
    %41 = vector.broadcast %40 : vector<2x1xi1> to vector<2x32xi1>
    %42 = arith.select %41, %39, %30 : vector<2x32xi1>, vector<2x32xf32>
    %c0_29 = arith.constant 0 : index
    %c0_30 = arith.constant 0 : index
    %43 = vector.load %arg16[%c0_29, %c0_30] : memref<2x32xf32, #tpu.memory_space<vmem>>, vector<2x32xf32>
    tpu.vector_store %arg16[%c0_29, %c0_30], %42 {strides = array<i32>} : memref<2x32xf32, #tpu.memory_space<vmem>>, vector<2x32xf32>,
    %cst_31 = arith.constant 0.000000e+00 : f32
    %44 = vector.shape_cast %5 : vector<2x1xi1> to vector<2x1xi1>
    %45 = vector.broadcast %44 : vector<2x1xi1> to vector<2x32xi1>
    %46 = vector.broadcast %cst_31 : f32 to vector<2x32xf32>
    %47 = arith.select %45, %39, %46 : vector<2x32xi1>, vector<2x32xf32>
    %48 = vector.broadcast %arg0 : i32 to vector<2x1xi32>
    %49 = arith.cmpi eq, %3, %48 : vector<2x1xi32>
    %c0_32 = arith.constant 0 : index
    %c0_33 = arith.constant 0 : index
    %50 = vector.load %arg17[%c0_32, %c0_33] : memref<2x32xf32, #tpu.memory_space<vmem>>, vector<2x32xf32>
    %51 = vector.shape_cast %49 : vector<2x1xi1> to vector<2x1xi1>
    %52 = vector.broadcast %51 : vector<2x1xi1> to vector<2x32xi1>
    %53 = arith.select %52, %47, %50 : vector<2x32xi1>, vector<2x32xf32>
    %c0_34 = arith.constant 0 : index
    %c0_35 = arith.constant 0 : index
    %54 = vector.load %arg17[%c0_34, %c0_35] : memref<2x32xf32, #tpu.memory_space<vmem>>, vector<2x32xf32>
    tpu.vector_store %arg17[%c0_34, %c0_35], %53 {strides = array<i32>} : memref<2x32xf32, #tpu.memory_space<vmem>>, vector<2x32xf32>,
    %c7_i32 = arith.constant 7 : i32
    %55 = arith.cmpi eq, %arg0, %c7_i32 : i32
    %56 = arith.extui %55 : i1 to i32
    %c0_i32_36 = arith.constant 0 : i32
    %57 = arith.cmpi ne, %56, %c0_i32_36 : i32
    scf.if %57 {
      %c0_37 = arith.constant 0 : index
      %c0_38 = arith.constant 0 : index
      %58 = vector.load %arg17[%c0_37, %c0_38] : memref<2x32xf32, #tpu.memory_space<vmem>>, vector<2x32xf32>
      %c0_39 = arith.constant 0 : index
      %c0_40 = arith.constant 0 : index
      %59 = vector.load %arg9[%c0_39, %c0_40] : memref<32x32xf32, #tpu.memory_space<vmem>>, vector<32x32xf32>
      %cst_41 = arith.constant dense<0.000000e+00> : vector<2x32xf32>
      %60 = tpu.matmul %58, %59, %cst_41 {dimension_numbers = #tpu.dot_dimension_numbers<[1], [0], [0], [1], [0, 0, 1, 1], [], []>} : vector<2x32xf32>, vector<32x32xf32>, vector<2x32xf32> -> vector<2x32xf32>
      %c0_42 = arith.constant 0 : index
      %c0_43 = arith.constant 0 : index
      %61 = vector.load %arg10[%c0_42, %c0_43] : memref<1x32xf32, #tpu.memory_space<vmem>>, vector<1x32xf32>
      %62 = vector.broadcast %61 : vector<1x32xf32> to vector<2x32xf32>
      %63 = arith.addf %60, %62 : vector<2x32xf32>
      %cst_44 = arith.constant 0.000000e+00 : f32
      %64 = vector.broadcast %cst_44 : f32 to vector<2x32xf32>
      %65 = arith.maximumf %63, %64 : vector<2x32xf32>
      %c0_45 = arith.constant 0 : index
      %c0_46 = arith.constant 0 : index
      %66 = vector.load %arg11[%c0_45, %c0_46] : memref<32x6xf32, #tpu.memory_space<vmem>>, vector<32x6xf32>
      %cst_47 = arith.constant dense<0.000000e+00> : vector<2x6xf32>
      %67 = tpu.matmul %65, %66, %cst_47 {dimension_numbers = #tpu.dot_dimension_numbers<[1], [0], [0], [1], [0, 0, 1, 1], [], []>} : vector<2x32xf32>, vector<32x6xf32>, vector<2x6xf32> -> vector<2x6xf32>
      %c0_48 = arith.constant 0 : index
      %c0_49 = arith.constant 0 : index
      %68 = vector.load %arg12[%c0_48, %c0_49] : memref<1x6xf32, #tpu.memory_space<vmem>>, vector<1x6xf32>
      %69 = vector.broadcast %68 : vector<1x6xf32> to vector<2x6xf32>
      %70 = arith.addf %67, %69 : vector<2x6xf32>
      %c0_50 = arith.constant 0 : index
      %c0_51 = arith.constant 0 : index
      %71 = vector.load %arg14[%c0_50, %c0_51] : memref<2x6xf32, #tpu.memory_space<vmem>>, vector<2x6xf32>
      tpu.vector_store %arg14[%c0_50, %c0_51], %70 {strides = array<i32>} : memref<2x6xf32, #tpu.memory_space<vmem>>, vector<2x6xf32>,
    } else {
    }
    return
  }
  func.func @transform_0(%arg0: i32) -> (i32, i32, i32) {
    %c0_i32 = arith.constant 0 : i32
    %c0_i32_0 = arith.constant 0 : i32
    %c0_i32_1 = arith.constant 0 : i32
    return %arg0, %c0_i32, %c0_i32_0 : i32, i32, i32
  }
  func.func @transform_1(%arg0: i32) -> (i32, i32) {
    %c0_i32 = arith.constant 0 : i32
    %c0_i32_0 = arith.constant 0 : i32
    %c0_i32_1 = arith.constant 0 : i32
    return %c0_i32, %c0_i32_0 : i32, i32
  }
  func.func @transform_2(%arg0: i32) -> (i32, i32) {
    %c0_i32 = arith.constant 0 : i32
    %c0_i32_0 = arith.constant 0 : i32
    %c0_i32_1 = arith.constant 0 : i32
    return %c0_i32, %c0_i32_0 : i32, i32
  }
  func.func @transform_3(%arg0: i32) -> (i32, i32) {
    %c0_i32 = arith.constant 0 : i32
    %c0_i32_0 = arith.constant 0 : i32
    %c0_i32_1 = arith.constant 0 : i32
    return %c0_i32, %c0_i32_0 : i32, i32
  }
  func.func @transform_4(%arg0: i32) -> (i32, i32) {
    %c0_i32 = arith.constant 0 : i32
    %c0_i32_0 = arith.constant 0 : i32
    %c0_i32_1 = arith.constant 0 : i32
    return %c0_i32, %c0_i32_0 : i32, i32
  }
  func.func @transform_5(%arg0: i32) -> (i32, i32) {
    %c0_i32 = arith.constant 0 : i32
    %c0_i32_0 = arith.constant 0 : i32
    %c0_i32_1 = arith.constant 0 : i32
    return %c0_i32, %c0_i32_0 : i32, i32
  }
  func.func @transform_6(%arg0: i32) -> (i32, i32) {
    %c0_i32 = arith.constant 0 : i32
    %c0_i32_0 = arith.constant 0 : i32
    %c0_i32_1 = arith.constant 0 : i32
    return %c0_i32, %c0_i32_0 : i32, i32
  }
  func.func @transform_7(%arg0: i32) -> (i32, i32) {
    %c0_i32 = arith.constant 0 : i32
    %c0_i32_0 = arith.constant 0 : i32
    %c0_i32_1 = arith.constant 0 : i32
    return %c0_i32, %c0_i32_0 : i32, i32
  }
  func.func @transform_8(%arg0: i32) -> (i32, i32) {
    %c0_i32 = arith.constant 0 : i32
    %c0_i32_0 = arith.constant 0 : i32
    %c0_i32_1 = arith.constant 0 : i32
    return %c0_i32, %c0_i32_0 : i32, i32
  }
  func.func @transform_9(%arg0: i32) -> (i32, i32) {
    %c0_i32 = arith.constant 0 : i32
    %c0_i32_0 = arith.constant 0 : i32
    %c0_i32_1 = arith.constant 0 : i32
    return %c0_i32, %c0_i32_0 : i32, i32
  }
  func.func @transform_10(%arg0: i32) -> (i32, i32) {
    %c0_i32 = arith.constant 0 : i32
    %c0_i32_0 = arith.constant 0 : i32
    %c0_i32_1 = arith.constant 0 : i32
    return %c0_i32, %c0_i32_0 : i32, i32
  }
  func.func @transform_11(%arg0: i32) -> (i32, i32) {
    %c0_i32 = arith.constant 0 : i32
    %c0_i32_0 = arith.constant 0 : i32
    %c0_i32_1 = arith.constant 0 : i32
    return %c0_i32, %c0_i32_0 : i32, i32
  }
  func.func @transform_12(%arg0: i32) -> (i32, i32, i32) {
    %c0_i32 = arith.constant 0 : i32
    %c0_i32_0 = arith.constant 0 : i32
    %c0_i32_1 = arith.constant 0 : i32
    %c0_i32_2 = arith.constant 0 : i32
    return %c0_i32, %c0_i32_0, %c0_i32_1 : i32, i32, i32
  }
  func.func @transform_13(%arg0: i32) -> (i32, i32) {
    %c0_i32 = arith.constant 0 : i32
    %c0_i32_0 = arith.constant 0 : i32
    %c0_i32_1 = arith.constant 0 : i32
    return %c0_i32, %c0_i32_0 : i32, i32
  }
}

</mosaic_0001>

<llo_original>
// kernel: my_network_noskip_forward.2
$region0: #{my_network_noskip_forward.2}
  #allocation0 [shape = 'u32[]', space=smem, size = 0x4, offset = 0x4, fixed_abs, tag = 'smem constant byte address 0x4 - core index']
  #allocation1 [shape = 'u32[144,128]{1,0:T(1,128)}', space=vmem, size = 0x12000, scoped, tag = 'internal scratch']
  %s0 = inlined_call_operand.vmem [shape: f32[16,5], index: 0, kind: input, shape index: {}]
  %s1 = inlined_call_operand.vmem [shape: f32[5,32], index: 1, kind: input, shape index: {}]
  %s2 = inlined_call_operand.vmem [shape: f32[1,32], index: 2, kind: input, shape index: {}]
  %s3 = inlined_call_operand.vmem [shape: f32[32,32], index: 3, kind: input, shape index: {}]
  %s4 = inlined_call_operand.vmem [shape: f32[1,32], index: 4, kind: input, shape index: {}]
  %s5 = inlined_call_operand.vmem [shape: f32[16,32], index: 5, kind: output, shape index: {}]
  %s6 = sld [smem:[#allocation0]]
  $region30: #{my_network_noskip_forward.2} parent=0
    _
  %s8 = ssub.s32 1, %s6
  %s9 = scalar_select 0, %s8, %s6
  // Predicated region
  $region2: #{my_network_noskip_forward.2} parent=0 // pred_check
    _
  $region3: #{my_network_noskip_forward.2} parent=0 // pred_check_branch
    %11 = sbr.rel (0) target = $region5
  $region4: #{my_network_noskip_forward.2} parent=0 // pred_region
    _
  $region5: #{my_network_noskip_forward.2} parent=0 // pred_fallthru
    _
  // Predicated region
  $region6: #{my_network_noskip_forward.2} parent=0 // pred_check
    _
  $region7: #{my_network_noskip_forward.2} parent=0 // pred_check_branch
    %13 = sbr.rel (0) target = $region9
  $region8: #{my_network_noskip_forward.2} parent=0 // pred_region
    _
  $region9: #{my_network_noskip_forward.2} parent=0 // pred_fallthru
    _
  // Predicated region
  $region10: #{my_network_noskip_forward.2} parent=0 // pred_check
    _
  $region11: #{my_network_noskip_forward.2} parent=0 // pred_check_branch
    %15 = sbr.rel (0) target = $region13
  $region12: #{my_network_noskip_forward.2} parent=0 // pred_region
    _
  $region13: #{my_network_noskip_forward.2} parent=0 // pred_fallthru
    _
  // Predicated region
  $region14: #{my_network_noskip_forward.2} parent=0 // pred_check
    _
  $region15: #{my_network_noskip_forward.2} parent=0 // pred_check_branch
    %17 = sbr.rel (0) target = $region17
  $region16: #{my_network_noskip_forward.2} parent=0 // pred_region
    _
  $region17: #{my_network_noskip_forward.2} parent=0 // pred_fallthru
    _
  // Predicated region
  $region18: #{my_network_noskip_forward.2} parent=0 // pred_check
    _
  $region19: #{my_network_noskip_forward.2} parent=0 // pred_check_branch
    %19 = sbr.rel (0) target = $region21
  $region20: #{my_network_noskip_forward.2} parent=0 // pred_region
    _
  $region21: #{my_network_noskip_forward.2} parent=0 // pred_fallthru
    _
  %v20 = vld [vmem:[%s0] sm:$0xff]
  %v21 = vld [vmem:[%s0 + $0x8] sm:$0xff]
  %v22 = vld [vmem:[%s1] sm:$0x1f]
  %v23 = vld [vmem:[%s2] sm:$0x1]
  %v25 = vlaneseq
  %v26 = vshrl.u32 %v25, 7
  %v27 = vsub.s32 0, %v26
  %v28 = vrot.slane %v23, %v27
  %vm30 = vcmask 39936
  %v32 = vsel %vm30, %v20, 0
  %v35 = vsel %vm30, %v21, 0
  %vm37 = vcmask 1044480
  %v39 = vsel %vm37, %v22, 0
  %41 = vmatprep.subr.mxu0 0.0
  %42 = vmatpush1.msra.mxu0 %v39
  %43 = vmatprep.subr.mxu0 0.0
  %44 = vmatpush1.msra.mxu0 0.0
  %45 = vmatprep.subr.mxu0 0.0
  %46 = vmatpush1.msra.mxu0 0.0
  %47 = vmatprep.subr.mxu0 0.0
  %48 = vmatpush1.msra.mxu0 0.0
  %49 = vmatprep.subr.mxu0 0.0
  %50 = vmatpush1.msra.mxu0 0.0
  %51 = vmatprep.subr.mxu0 0.0
  %52 = vmatpush1.msra.mxu0 0.0
  %53 = vmatprep.subr.mxu0 0.0
  %54 = vmatpush1.msra.mxu0 0.0
  %55 = vmatprep.subr.mxu0 0.0
  %56 = vmatpush1.msra.mxu0 0.0
  %57 = vmatprep.subr.mxu0 0.0
  %58 = vmatpush1.msra.mxu0 0.0
  %59 = vmatprep.subr.mxu0 0.0
  %60 = vmatpush1.msra.mxu0 0.0
  %61 = vmatprep.subr.mxu0 0.0
  %62 = vmatpush1.msra.mxu0 0.0
  %63 = vmatprep.subr.mxu0 0.0
  %64 = vmatpush1.msra.mxu0 0.0
  %65 = vmatprep.subr.mxu0 0.0
  %66 = vmatpush1.msra.mxu0 0.0
  %67 = vmatprep.subr.mxu0 0.0
  %68 = vmatpush1.msra.mxu0 0.0
  %69 = vmatprep.subr.mxu0 0.0
  %70 = vmatpush1.msra.mxu0 0.0
  %71 = vmatprep.subr.mxu0 0.0
  %72 = vmatpush1.msra.mxu0 0.0
  %73 = vmatprep.subr.mxu0 0.0
  %74 = vmatpush1.msra.mxu0 0.0
  %75 = vmatprep.subr.mxu0 0.0
  %76 = vmatpush1.msra.mxu0 0.0
  %77 = vmatprep.subr.mxu0 0.0
  %78 = vmatpush1.msra.mxu0 0.0
  %79 = vmatprep.subr.mxu0 0.0
  %80 = vmatpush1.msra.mxu0 0.0
  %81 = vmatprep.subr.mxu0 0.0
  %82 = vmatpush1.msra.mxu0 0.0
  %83 = vmatprep.subr.mxu0 0.0
  %84 = vmatpush1.msra.mxu0 0.0
  %85 = vmatprep.subr.mxu0 0.0
  %86 = vmatpush1.msra.mxu0 0.0
  %87 = vmatprep.subr.mxu0 0.0
  %88 = vmatpush1.msra.mxu0 0.0
  %89 = vmatprep.subr.mxu0 0.0
  %90 = vmatpush1.msra.mxu0 0.0
  %91 = vmatprep.subr.mxu0 0.0
  %92 = vmatpush1.msra.mxu0 0.0
  %93 = vmatprep.subr.mxu0 0.0
  %94 = vmatpush1.msra.mxu0 0.0
  %95 = vmatprep.subr.mxu0 0.0
  %96 = vmatpush1.msra.mxu0 0.0
  %97 = vmatprep.subr.mxu0 0.0
  %98 = vmatpush1.msra.mxu0 0.0
  %99 = vmatprep.subr.mxu0 0.0
  %100 = vmatpush1.msra.mxu0 0.0
  %101 = vmatprep.subr.mxu0 0.0
  %102 = vmatpush1.msra.mxu0 0.0
  %103 = vmatprep.subr.mxu0 0.0
  %104 = vmatpush1.msra.mxu0 0.0
  %105 = vmatprep.mubr.f32.mxu0 0.0
  %106 = vmatmul.mubr.f32.gmra.mrb[0].mxu0 %v32
  %v107 = vpop.f32.mrb[0].mxu0
  %v108 = vadd.f32 %v28, %v107
  %v109 = vpop.f32.mrb[0].mxu0
  %110 = vmatprep.mubr.f32.mxu0 0.0
  %111 = vmatmul.mubr.f32.gmra.mrb[0].mxu0 %v35
  %v112 = vpop.f32.mrb[0].mxu0
  %v113 = vadd.f32 %v28, %v112
  %v114 = vpop.f32.mrb[0].mxu0
  %115 = vdwg.mxu0
  %v116 = vtanh.pop %v108
  %v117 = vtanh.pop %v113
  %v118 = vld [vmem:[%s3] sm:$0xff]
  %v119 = vld [vmem:[%s3 + $0x8] sm:$0xff]
  %v120 = vld [vmem:[%s3 + $0x10] sm:$0xff]
  %v121 = vld [vmem:[%s3 + $0x18] sm:$0xff]
  %v122 = vld [vmem:[%s4] sm:$0x1]
  %v124 = vlaneseq
  %v125 = vshrl.u32 %v124, 7
  %v126 = vsub.s32 0, %v125
  %v127 = vrot.slane %v122, %v126
  %vm129 = vcmask 261120
  %v131 = vsel %vm129, %v116, 0
  %v134 = vsel %vm129, %v117, 0
  %136 = vmatprep.subr.mxu0 0.0
  %137 = vmatpush1.msra.mxu0 %v118
  %138 = vmatprep.subr.mxu0 0.0
  %139 = vmatpush1.msra.mxu0 %v119
  %140 = vmatprep.subr.mxu0 0.0
  %141 = vmatpush1.msra.mxu0 %v120
  %142 = vmatprep.subr.mxu0 0.0
  %143 = vmatpush1.msra.mxu0 %v121
  %144 = vmatprep.subr.mxu0 0.0
  %145 = vmatpush1.msra.mxu0 0.0
  %146 = vmatprep.subr.mxu0 0.0
  %147 = vmatpush1.msra.mxu0 0.0
  %148 = vmatprep.subr.mxu0 0.0
  %149 = vmatpush1.msra.mxu0 0.0
  %150 = vmatprep.subr.mxu0 0.0
  %151 = vmatpush1.msra.mxu0 0.0
  %152 = vmatprep.subr.mxu0 0.0
  %153 = vmatpush1.msra.mxu0 0.0
  %154 = vmatprep.subr.mxu0 0.0
  %155 = vmatpush1.msra.mxu0 0.0
  %156 = vmatprep.subr.mxu0 0.0
  %157 = vmatpush1.msra.mxu0 0.0
  %158 = vmatprep.subr.mxu0 0.0
  %159 = vmatpush1.msra.mxu0 0.0
  %160 = vmatprep.subr.mxu0 0.0
  %161 = vmatpush1.msra.mxu0 0.0
  %162 = vmatprep.subr.mxu0 0.0
  %163 = vmatpush1.msra.mxu0 0.0
  %164 = vmatprep.subr.mxu0 0.0
  %165 = vmatpush1.msra.mxu0 0.0
  %166 = vmatprep.subr.mxu0 0.0
  %167 = vmatpush1.msra.mxu0 0.0
  %168 = vmatprep.subr.mxu0 0.0
  %169 = vmatpush1.msra.mxu0 0.0
  %170 = vmatprep.subr.mxu0 0.0
  %171 = vmatpush1.msra.mxu0 0.0
  %172 = vmatprep.subr.mxu0 0.0
  %173 = vmatpush1.msra.mxu0 0.0
  %174 = vmatprep.subr.mxu0 0.0
  %175 = vmatpush1.msra.mxu0 0.0
  %176 = vmatprep.subr.mxu0 0.0
  %177 = vmatpush1.msra.mxu0 0.0
  %178 = vmatprep.subr.mxu0 0.0
  %179 = vmatpush1.msra.mxu0 0.0
  %180 = vmatprep.subr.mxu0 0.0
  %181 = vmatpush1.msra.mxu0 0.0
  %182 = vmatprep.subr.mxu0 0.0
  %183 = vmatpush1.msra.mxu0 0.0
  %184 = vmatprep.subr.mxu0 0.0
  %185 = vmatpush1.msra.mxu0 0.0
  %186 = vmatprep.subr.mxu0 0.0
  %187 = vmatpush1.msra.mxu0 0.0
  %188 = vmatprep.subr.mxu0 0.0
  %189 = vmatpush1.msra.mxu0 0.0
  %190 = vmatprep.subr.mxu0 0.0
  %191 = vmatpush1.msra.mxu0 0.0
  %192 = vmatprep.subr.mxu0 0.0
  %193 = vmatpush1.msra.mxu0 0.0
  %194 = vmatprep.subr.mxu0 0.0
  %195 = vmatpush1.msra.mxu0 0.0
  %196 = vmatprep.subr.mxu0 0.0
  %197 = vmatpush1.msra.mxu0 0.0
  %198 = vmatprep.subr.mxu0 0.0
  %199 = vmatpush1.msra.mxu0 0.0
  %200 = vmatprep.mubr.f32.mxu0 0.0
  %201 = vmatmul.mubr.f32.gmra.mrb[0].mxu0 %v131
  %v202 = vpop.f32.mrb[0].mxu0
  %v203 = vadd.f32 %v127, %v202
  %v204 = vpop.f32.mrb[0].mxu0
  %205 = vmatprep.mubr.f32.mxu0 0.0
  %206 = vmatmul.mubr.f32.gmra.mrb[0].mxu0 %v134
  %v207 = vpop.f32.mrb[0].mxu0
  %v208 = vadd.f32 %v127, %v207
  %v209 = vpop.f32.mrb[0].mxu0
  %210 = vdwg.mxu0
  %211 = vst.msk [vmem:[%s5] sm:$0xff] %vm129, %v203
  %212 = vst.msk [vmem:[%s5 + $0x8] sm:$0xff] %vm129, %v208
  // Predicated region
  $region22: #{my_network_noskip_forward.2} parent=0 // pred_check
    _
  $region23: #{my_network_noskip_forward.2} parent=0 // pred_check_branch
    %214 = sbr.rel (0) target = $region25
  $region24: #{my_network_noskip_forward.2} parent=0 // pred_region
    _
  $region25: #{my_network_noskip_forward.2} parent=0 // pred_fallthru
    _
  // Predicated region
  $region26: #{my_network_noskip_forward.2} parent=0 // pred_check
    _
  $region27: #{my_network_noskip_forward.2} parent=0 // pred_check_branch
    %216 = sbr.rel (0) target = $region29
  $region28: #{my_network_noskip_forward.2} parent=0 // pred_region
    _
  $region29: #{my_network_noskip_forward.2} parent=0 // pred_fallthru
    _

// kernel: my_network_noskip_forward.3
$region0: #{my_network_noskip_forward.3}
  #allocation0 [shape = 'u32[]', space=smem, size = 0x4, offset = 0x4, fixed_abs, tag = 'smem constant byte address 0x4 - core index']
  #allocation1 [shape = 'u32[144,128]{1,0:T(1,128)}', space=vmem, size = 0x12000, scoped, tag = 'internal scratch']
  #allocation2 [shape = 'f32[2,32]{1,0:T(2,128)}', space=vmem, size = 0x400, scoped, tag = 'scratch operand']
  #allocation3 [shape = 'f32[2,32]{1,0:T(2,128)}', space=vmem, size = 0x400, scoped, tag = 'scratch operand']
  #allocation4 [shape = 'f32[2,32]{1,0:T(2,128)}', space=vmem, size = 0x400, scoped, tag = 'scratch operand']
  %s0 = inlined_call_operand.vmem [shape: f32[8,2,32], index: 0, kind: input, shape index: {}]
  %s1 = inlined_call_operand.vmem [shape: s32[2,1], index: 1, kind: input, shape index: {}]
  %s2 = inlined_call_operand.vmem [shape: f32[32,32], index: 2, kind: input, shape index: {}]
  %s3 = inlined_call_operand.vmem [shape: f32[32,32], index: 3, kind: input, shape index: {}]
  %s4 = inlined_call_operand.vmem [shape: f32[1,32], index: 4, kind: input, shape index: {}]
  %s5 = inlined_call_operand.vmem [shape: f32[32,32], index: 5, kind: input, shape index: {}]
  %s6 = inlined_call_operand.vmem [shape: f32[32,3], index: 6, kind: input, shape index: {}]
  %s7 = inlined_call_operand.vmem [shape: f32[1,3], index: 7, kind: input, shape index: {}]
  %s8 = inlined_call_operand.vmem [shape: f32[32,32], index: 8, kind: input, shape index: {}]
  %s9 = inlined_call_operand.vmem [shape: f32[1,32], index: 9, kind: input, shape index: {}]
  %s10 = inlined_call_operand.vmem [shape: f32[32,6], index: 10, kind: input, shape index: {}]
  %s11 = inlined_call_operand.vmem [shape: f32[1,6], index: 11, kind: input, shape index: {}]
  %s12 = inlined_call_operand.vmem [shape: f32[8,2,3], index: 12, kind: output, shape index: {0}]
  %s13 = inlined_call_operand.hbm [shape: f32[2,6], index: 13, kind: output, shape index: {1}]
  %14 = xla_tuple %s12, %s13
  %s15 = sld [smem:[#allocation0]]
  $region97: #{my_network_noskip_forward.3} parent=0
    _
  %s17 = ssub.s32 1, %s15
  %s18 = scalar_select 0, %s17, %s15
  $region1: #{my_network_noskip_forward.3} parent=0
    #allocation5 [shape = 'u8[1024]{0}', space=vmem, size = 0x400, scoped, tag = 'output window, operand 1, single buffered']
    #allocation6 [shape = 's32[2]{0}', space=sflag, size = 0x8, scoped, tag = 'scoped memory for my_network_noskip_forward.3']
    %19 = vsyncpa [#allocation6], 0
    loop: start=0, step=1, limit=10
    $region2: #{my_network_noskip_forward.3} parent=1 // loop_pre_header
      _
    $region3: #{my_network_noskip_forward.3} parent=1 // loop_header
      %s21 = sphi 0, %s25
      %p22 = scmp.ge.s32.totalorder %s21, 10
      %s31 = sphi 0, %s33
      %s34 = sphi 0, %s31
      %s35 = sphi 0, %s34
      %s51 = sphi 0, %s35
      %s55 = sphi 0, %s55
      %s57 = sphi 0, %s55
      %s58 = sphi 0, %s57
      %s72 = sphi 0, %s58
      %s76 = sphi 0, %s76
      %s78 = sphi 0, %s76
      %s79 = sphi 0, %s78
      %s93 = sphi 0, %s79
      %s97 = sphi 0, %s97
      %s99 = sphi 0, %s97
      %s100 = sphi 0, %s99
      %s114 = sphi 0, %s100
      %s118 = sphi 0, %s118
      %s120 = sphi 0, %s118
      %s121 = sphi 0, %s120
      %s135 = sphi 0, %s121
      %s139 = sphi 0, %s139
      %s141 = sphi 0, %s139
      %s142 = sphi 0, %s141
      %s156 = sphi 0, %s142
      %s160 = sphi 0, %s160
      %s162 = sphi 0, %s160
      %s163 = sphi 0, %s162
      %s177 = sphi 0, %s163
      %s181 = sphi 0, %s181
      %s183 = sphi 0, %s181
      %s184 = sphi 0, %s183
      %s198 = sphi 0, %s184
      %s202 = sphi 0, %s202
      %s204 = sphi 0, %s202
      %s205 = sphi 0, %s204
      %s219 = sphi 0, %s205
      %s223 = sphi 0, %s223
      %s225 = sphi 0, %s223
      %s226 = sphi 0, %s225
      %s240 = sphi 0, %s226
      %s244 = sphi 0, %s244
      %s246 = sphi 0, %s244
      %s247 = sphi 0, %s246
      %s261 = sphi 0, %s247
      %s265 = sphi 0, %s265
      %s267 = sphi 0, %s265
      %s268 = sphi 0, %s267
      %s282 = sphi 0, %s268
      %s286 = sphi 0, %s286
      %s288 = sphi 0, %s286
      %s289 = sphi 0, %s288
      %s303 = sphi 0, %s289
      %s307 = sphi 0, %s307
      %s309 = sphi 0, %s307
      %s310 = sphi 0, %s309
      %s324 = sphi 0, %s310
    $region4: #{my_network_noskip_forward.3} parent=1 // loop_header_branch
      %24 = sbr.rel (%p22) target = $region8
    $region5: #{my_network_noskip_forward.3} parent=1 // loop_body
      %s26 = ssub.s32 %s21, 1
      %s27 = ssub.s32 %s21, 2
      %s28 = sadd.s32 %s21, 1
      %s29 = ssub.s32 %s21, %s28
      %p30 = scmp.eq.s32.totalorder %s29, 0
      %s32 = sadd.s32 %s31, 1
      %s33 = scalar_select %p30, %s31, %s32
      %p36 = pneg %p30
      %p37 = scmp.eq.s32.totalorder %s21, 7
      %p38 = por %p36, %p37
      %p39 = scmp.ne.s32.totalorder %s31, %s34
      %p40 = scmp.eq.s32.totalorder %s21, 0
      %p41 = por %p39, %p40
      %p42 = scmp.ne.s32.totalorder %s31, %s34
      %p43 = scmp.eq.s32.totalorder %s26, 7
      %p44 = por %p42, %p43
      %p45 = scmp.ne.s32.totalorder %s34, %s35
      %p46 = scmp.eq.s32.totalorder %s26, 0
      %p47 = por %p45, %p46
      %p48 = scmp.ne.s32.totalorder %s34, %s35
      %p49 = scmp.eq.s32.totalorder %s27, 7
      %p50 = por %p48, %p49
      %p52 = scmp.ne.s32.totalorder %s35, %s51
      %p53 = scmp.eq.s32.totalorder %s27, 0
      %p54 = por %p52, %p53
      %s56 = sadd.s32 %s55, 1
      %p59 = scmp.eq.s32.totalorder %s21, 7
      %p60 = scmp.ne.s32.totalorder %s55, %s57
      %p61 = scmp.eq.s32.totalorder %s21, 0
      %p62 = por %p60, %p61
      %p63 = scmp.ne.s32.totalorder %s55, %s57
      %p64 = scmp.eq.s32.totalorder %s26, 7
      %p65 = por %p63, %p64
      %p66 = scmp.ne.s32.totalorder %s57, %s58
      %p67 = scmp.eq.s32.totalorder %s26, 0
      %p68 = por %p66, %p67
      %p69 = scmp.ne.s32.totalorder %s57, %s58
      %p70 = scmp.eq.s32.totalorder %s27, 7
      %p71 = por %p69, %p70
      %p73 = scmp.ne.s32.totalorder %s58, %s72
      %p74 = scmp.eq.s32.totalorder %s27, 0
      %p75 = por %p73, %p74
      %s77 = sadd.s32 %s76, 1
      %p80 = scmp.eq.s32.totalorder %s21, 7
      %p81 = scmp.ne.s32.totalorder %s76, %s78
      %p82 = scmp.eq.s32.totalorder %s21, 0
      %p83 = por %p81, %p82
      %p84 = scmp.ne.s32.totalorder %s76, %s78
      %p85 = scmp.eq.s32.totalorder %s26, 7
      %p86 = por %p84, %p85
      %p87 = scmp.ne.s32.totalorder %s78, %s79
      %p88 = scmp.eq.s32.totalorder %s26, 0
      %p89 = por %p87, %p88
      %p90 = scmp.ne.s32.totalorder %s78, %s79
      %p91 = scmp.eq.s32.totalorder %s27, 7
      %p92 = por %p90, %p91
      %p94 = scmp.ne.s32.totalorder %s79, %s93
      %p95 = scmp.eq.s32.totalorder %s27, 0
      %p96 = por %p94, %p95
      %s98 = sadd.s32 %s97, 1
      %p101 = scmp.eq.s32.totalorder %s21, 7
      %p102 = scmp.ne.s32.totalorder %s97, %s99
      %p103 = scmp.eq.s32.totalorder %s21, 0
      %p104 = por %p102, %p103
      %p105 = scmp.ne.s32.totalorder %s97, %s99
      %p106 = scmp.eq.s32.totalorder %s26, 7
      %p107 = por %p105, %p106
      %p108 = scmp.ne.s32.totalorder %s99, %s100
      %p109 = scmp.eq.s32.totalorder %s26, 0
      %p110 = por %p108, %p109
      %p111 = scmp.ne.s32.totalorder %s99, %s100
      %p112 = scmp.eq.s32.totalorder %s27, 7
      %p113 = por %p111, %p112
      %p115 = scmp.ne.s32.totalorder %s100, %s114
      %p116 = scmp.eq.s32.totalorder %s27, 0
      %p117 = por %p115, %p116
      %s119 = sadd.s32 %s118, 1
      %p122 = scmp.eq.s32.totalorder %s21, 7
      %p123 = scmp.ne.s32.totalorder %s118, %s120
      %p124 = scmp.eq.s32.totalorder %s21, 0
      %p125 = por %p123, %p124
      %p126 = scmp.ne.s32.totalorder %s118, %s120
      %p127 = scmp.eq.s32.totalorder %s26, 7
      %p128 = por %p126, %p127
      %p129 = scmp.ne.s32.totalorder %s120, %s121
      %p130 = scmp.eq.s32.totalorder %s26, 0
      %p131 = por %p129, %p130
      %p132 = scmp.ne.s32.totalorder %s120, %s121
      %p133 = scmp.eq.s32.totalorder %s27, 7
      %p134 = por %p132, %p133
      %p136 = scmp.ne.s32.totalorder %s121, %s135
      %p137 = scmp.eq.s32.totalorder %s27, 0
      %p138 = por %p136, %p137
      %s140 = sadd.s32 %s139, 1
      %p143 = scmp.eq.s32.totalorder %s21, 7
      %p144 = scmp.ne.s32.totalorder %s139, %s141
      %p145 = scmp.eq.s32.totalorder %s21, 0
      %p146 = por %p144, %p145
      %p147 = scmp.ne.s32.totalorder %s139, %s141
      %p148 = scmp.eq.s32.totalorder %s26, 7
      %p149 = por %p147, %p148
      %p150 = scmp.ne.s32.totalorder %s141, %s142
      %p151 = scmp.eq.s32.totalorder %s26, 0
      %p152 = por %p150, %p151
      %p153 = scmp.ne.s32.totalorder %s141, %s142
      %p154 = scmp.eq.s32.totalorder %s27, 7
      %p155 = por %p153, %p154
      %p157 = scmp.ne.s32.totalorder %s142, %s156
      %p158 = scmp.eq.s32.totalorder %s27, 0
      %p159 = por %p157, %p158
      %s161 = sadd.s32 %s160, 1
      %p164 = scmp.eq.s32.totalorder %s21, 7
      %p165 = scmp.ne.s32.totalorder %s160, %s162
      %p166 = scmp.eq.s32.totalorder %s21, 0
      %p167 = por %p165, %p166
      %p168 = scmp.ne.s32.totalorder %s160, %s162
      %p169 = scmp.eq.s32.totalorder %s26, 7
      %p170 = por %p168, %p169
      %p171 = scmp.ne.s32.totalorder %s162, %s163
      %p172 = scmp.eq.s32.totalorder %s26, 0
      %p173 = por %p171, %p172
      %p174 = scmp.ne.s32.totalorder %s162, %s163
      %p175 = scmp.eq.s32.totalorder %s27, 7
      %p176 = por %p174, %p175
      %p178 = scmp.ne.s32.totalorder %s163, %s177
      %p179 = scmp.eq.s32.totalorder %s27, 0
      %p180 = por %p178, %p179
      %s182 = sadd.s32 %s181, 1
      %p185 = scmp.eq.s32.totalorder %s21, 7
      %p186 = scmp.ne.s32.totalorder %s181, %s183
      %p187 = scmp.eq.s32.totalorder %s21, 0
      %p188 = por %p186, %p187
      %p189 = scmp.ne.s32.totalorder %s181, %s183
      %p190 = scmp.eq.s32.totalorder %s26, 7
      %p191 = por %p189, %p190
      %p192 = scmp.ne.s32.totalorder %s183, %s184
      %p193 = scmp.eq.s32.totalorder %s26, 0
      %p194 = por %p192, %p193
      %p195 = scmp.ne.s32.totalorder %s183, %s184
      %p196 = scmp.eq.s32.totalorder %s27, 7
      %p197 = por %p195, %p196
      %p199 = scmp.ne.s32.totalorder %s184, %s198
      %p200 = scmp.eq.s32.totalorder %s27, 0
      %p201 = por %p199, %p200
      %s203 = sadd.s32 %s202, 1
      %p206 = scmp.eq.s32.totalorder %s21, 7
      %p207 = scmp.ne.s32.totalorder %s202, %s204
      %p208 = scmp.eq.s32.totalorder %s21, 0
      %p209 = por %p207, %p208
      %p210 = scmp.ne.s32.totalorder %s202, %s204
      %p211 = scmp.eq.s32.totalorder %s26, 7
      %p212 = por %p210, %p211
      %p213 = scmp.ne.s32.totalorder %s204, %s205
      %p214 = scmp.eq.s32.totalorder %s26, 0
      %p215 = por %p213, %p214
      %p216 = scmp.ne.s32.totalorder %s204, %s205
      %p217 = scmp.eq.s32.totalorder %s27, 7
      %p218 = por %p216, %p217
      %p220 = scmp.ne.s32.totalorder %s205, %s219
      %p221 = scmp.eq.s32.totalorder %s27, 0
      %p222 = por %p220, %p221
      %s224 = sadd.s32 %s223, 1
      %p227 = scmp.eq.s32.totalorder %s21, 7
      %p228 = scmp.ne.s32.totalorder %s223, %s225
      %p229 = scmp.eq.s32.totalorder %s21, 0
      %p230 = por %p228, %p229
      %p231 = scmp.ne.s32.totalorder %s223, %s225
      %p232 = scmp.eq.s32.totalorder %s26, 7
      %p233 = por %p231, %p232
      %p234 = scmp.ne.s32.totalorder %s225, %s226
      %p235 = scmp.eq.s32.totalorder %s26, 0
      %p236 = por %p234, %p235
      %p237 = scmp.ne.s32.totalorder %s225, %s226
      %p238 = scmp.eq.s32.totalorder %s27, 7
      %p239 = por %p237, %p238
      %p241 = scmp.ne.s32.totalorder %s226, %s240
      %p242 = scmp.eq.s32.totalorder %s27, 0
      %p243 = por %p241, %p242
      %s245 = sadd.s32 %s244, 1
      %p248 = scmp.eq.s32.totalorder %s21, 7
      %p249 = scmp.ne.s32.totalorder %s244, %s246
      %p250 = scmp.eq.s32.totalorder %s21, 0
      %p251 = por %p249, %p250
      %p252 = scmp.ne.s32.totalorder %s244, %s246
      %p253 = scmp.eq.s32.totalorder %s26, 7
      %p254 = por %p252, %p253
      %p255 = scmp.ne.s32.totalorder %s246, %s247
      %p256 = scmp.eq.s32.totalorder %s26, 0
      %p257 = por %p255, %p256
      %p258 = scmp.ne.s32.totalorder %s246, %s247
      %p259 = scmp.eq.s32.totalorder %s27, 7
      %p260 = por %p258, %p259
      %p262 = scmp.ne.s32.totalorder %s247, %s261
      %p263 = scmp.eq.s32.totalorder %s27, 0
      %p264 = por %p262, %p263
      %s266 = sadd.s32 %s265, 1
      %p269 = scmp.eq.s32.totalorder %s21, 7
      %p270 = scmp.ne.s32.totalorder %s265, %s267
      %p271 = scmp.eq.s32.totalorder %s21, 0
      %p272 = por %p270, %p271
      %p273 = scmp.ne.s32.totalorder %s265, %s267
      %p274 = scmp.eq.s32.totalorder %s26, 7
      %p275 = por %p273, %p274
      %p276 = scmp.ne.s32.totalorder %s267, %s268
      %p277 = scmp.eq.s32.totalorder %s26, 0
      %p278 = por %p276, %p277
      %p279 = scmp.ne.s32.totalorder %s267, %s268
      %p280 = scmp.eq.s32.totalorder %s27, 7
      %p281 = por %p279, %p280
      %p283 = scmp.ne.s32.totalorder %s268, %s282
      %p284 = scmp.eq.s32.totalorder %s27, 0
      %p285 = por %p283, %p284
      %s287 = sadd.s32 %s286, 1
      %p290 = scmp.eq.s32.totalorder %s21, 7
      %p291 = scmp.ne.s32.totalorder %s286, %s288
      %p292 = scmp.eq.s32.totalorder %s21, 0
      %p293 = por %p291, %p292
      %p294 = scmp.ne.s32.totalorder %s286, %s288
      %p295 = scmp.eq.s32.totalorder %s26, 7
      %p296 = por %p294, %p295
      %p297 = scmp.ne.s32.totalorder %s288, %s289
      %p298 = scmp.eq.s32.totalorder %s26, 0
      %p299 = por %p297, %p298
      %p300 = scmp.ne.s32.totalorder %s288, %s289
      %p301 = scmp.eq.s32.totalorder %s27, 7
      %p302 = por %p300, %p301
      %p304 = scmp.ne.s32.totalorder %s289, %s303
      %p305 = scmp.eq.s32.totalorder %s27, 0
      %p306 = por %p304, %p305
      %s308 = sadd.s32 %s307, 1
      %p311 = scmp.eq.s32.totalorder %s21, 7
      %p312 = scmp.ne.s32.totalorder %s307, %s309
      %p313 = scmp.eq.s32.totalorder %s21, 0
      %p314 = por %p312, %p313
      %p315 = scmp.ne.s32.totalorder %s307, %s309
      %p316 = scmp.eq.s32.totalorder %s26, 7
      %p317 = por %p315, %p316
      %p318 = scmp.ne.s32.totalorder %s309, %s310
      %p319 = scmp.eq.s32.totalorder %s26, 0
      %p320 = por %p318, %p319
      %p321 = scmp.ne.s32.totalorder %s309, %s310
      %p322 = scmp.eq.s32.totalorder %s27, 7
      %p323 = por %p321, %p322
      %p325 = scmp.ne.s32.totalorder %s310, %s324
      %p326 = scmp.eq.s32.totalorder %s27, 0
      %p327 = por %p325, %p326
      %p328 = scmp.le.s32.totalorder 1, %s21
      %p329 = scmp.lt.s32.totalorder %s21, 9
      %p330 = pnand %p328, %p329
      %p331 = pneg %p330
      // Predicated region
      $region9: #{my_network_noskip_forward.3} parent=5 // pred_check
        _
      $region10: #{my_network_noskip_forward.3} parent=5 // pred_check_branch
        %333 = sbr.rel (%p330) target = $region12
      $region11: #{my_network_noskip_forward.3} parent=5 // pred_region
        %s334 = ssub.s32 %s21, 1
        // Predicated region
        $region13: #{my_network_noskip_forward.3} parent=11 // pred_check
          %p335 = pneg %p68
        $region14: #{my_network_noskip_forward.3} parent=11 // pred_check_branch
          %337 = sbr.rel (%p335) target = $region16
        $region15: #{my_network_noskip_forward.3} parent=11 // pred_region
          _
        $region16: #{my_network_noskip_forward.3} parent=11 // pred_fallthru
          _
        // Predicated region
        $region17: #{my_network_noskip_forward.3} parent=11 // pred_check
          %p338 = pneg %p89
        $region18: #{my_network_noskip_forward.3} parent=11 // pred_check_branch
          %340 = sbr.rel (%p338) target = $region20
        $region19: #{my_network_noskip_forward.3} parent=11 // pred_region
          _
        $region20: #{my_network_noskip_forward.3} parent=11 // pred_fallthru
          _
        // Predicated region
        $region21: #{my_network_noskip_forward.3} parent=11 // pred_check
          %p341 = pneg %p110
        $region22: #{my_network_noskip_forward.3} parent=11 // pred_check_branch
          %343 = sbr.rel (%p341) target = $region24
        $region23: #{my_network_noskip_forward.3} parent=11 // pred_region
          _
        $region24: #{my_network_noskip_forward.3} parent=11 // pred_fallthru
          _
        // Predicated region
        $region25: #{my_network_noskip_forward.3} parent=11 // pred_check
          %p344 = pneg %p131
        $region26: #{my_network_noskip_forward.3} parent=11 // pred_check_branch
          %346 = sbr.rel (%p344) target = $region28
        $region27: #{my_network_noskip_forward.3} parent=11 // pred_region
          _
        $region28: #{my_network_noskip_forward.3} parent=11 // pred_fallthru
          _
        // Predicated region
        $region29: #{my_network_noskip_forward.3} parent=11 // pred_check
          %p347 = pneg %p152
        $region30: #{my_network_noskip_forward.3} parent=11 // pred_check_branch
          %349 = sbr.rel (%p347) target = $region32
        $region31: #{my_network_noskip_forward.3} parent=11 // pred_region
          _
        $region32: #{my_network_noskip_forward.3} parent=11 // pred_fallthru
          _
        // Predicated region
        $region33: #{my_network_noskip_forward.3} parent=11 // pred_check
          %p350 = pneg %p173
        $region34: #{my_network_noskip_forward.3} parent=11 // pred_check_branch
          %352 = sbr.rel (%p350) target = $region36
        $region35: #{my_network_noskip_forward.3} parent=11 // pred_region
          _
        $region36: #{my_network_noskip_forward.3} parent=11 // pred_fallthru
          _
        // Predicated region
        $region37: #{my_network_noskip_forward.3} parent=11 // pred_check
          %p353 = pneg %p194
        $region38: #{my_network_noskip_forward.3} parent=11 // pred_check_branch
          %355 = sbr.rel (%p353) target = $region40
        $region39: #{my_network_noskip_forward.3} parent=11 // pred_region
          _
        $region40: #{my_network_noskip_forward.3} parent=11 // pred_fallthru
          _
        // Predicated region
        $region41: #{my_network_noskip_forward.3} parent=11 // pred_check
          %p356 = pneg %p215
        $region42: #{my_network_noskip_forward.3} parent=11 // pred_check_branch
          %358 = sbr.rel (%p356) target = $region44
        $region43: #{my_network_noskip_forward.3} parent=11 // pred_region
          _
        $region44: #{my_network_noskip_forward.3} parent=11 // pred_fallthru
          _
        // Predicated region
        $region45: #{my_network_noskip_forward.3} parent=11 // pred_check
          %p359 = pneg %p236
        $region46: #{my_network_noskip_forward.3} parent=11 // pred_check_branch
          %361 = sbr.rel (%p359) target = $region48
        $region47: #{my_network_noskip_forward.3} parent=11 // pred_region
          _
        $region48: #{my_network_noskip_forward.3} parent=11 // pred_fallthru
          _
        // Predicated region
        $region49: #{my_network_noskip_forward.3} parent=11 // pred_check
          %p362 = pneg %p257
        $region50: #{my_network_noskip_forward.3} parent=11 // pred_check_branch
          %364 = sbr.rel (%p362) target = $region52
        $region51: #{my_network_noskip_forward.3} parent=11 // pred_region
          _
        $region52: #{my_network_noskip_forward.3} parent=11 // pred_fallthru
          _
        // Predicated region
        $region53: #{my_network_noskip_forward.3} parent=11 // pred_check
          %p365 = pneg %p278
        $region54: #{my_network_noskip_forward.3} parent=11 // pred_check_branch
          %367 = sbr.rel (%p365) target = $region56
        $region55: #{my_network_noskip_forward.3} parent=11 // pred_region
          _
        $region56: #{my_network_noskip_forward.3} parent=11 // pred_fallthru
          _
      $region12: #{my_network_noskip_forward.3} parent=5 // pred_fallthru
        _
      %p368 = scmp.lt.s32.totalorder %s21, 8
      // Predicated region
      $region57: #{my_network_noskip_forward.3} parent=5 // pred_check
        %p369 = pneg %p368
      $region58: #{my_network_noskip_forward.3} parent=5 // pred_check_branch
        %371 = sbr.rel (%p369) target = $region60
      $region59: #{my_network_noskip_forward.3} parent=5 // pred_region
        // Predicated region
        $region61: #{my_network_noskip_forward.3} parent=59 // pred_check
          %p372 = pneg %p41
        $region62: #{my_network_noskip_forward.3} parent=59 // pred_check_branch
          %374 = sbr.rel (%p372) target = $region64
        $region63: #{my_network_noskip_forward.3} parent=59 // pred_region
          %p375 = scmp.lt.s32.totalorder %s21, 7
          %s376 = scalar_select %p375, %s21, 7
          %s377 = smul.addr %s376, 2
          %s378 = scalar_lea.vmem %s0, %s377
        $region64: #{my_network_noskip_forward.3} parent=59 // pred_fallthru
          _
      $region60: #{my_network_noskip_forward.3} parent=5 // pred_fallthru
        _
      %p379 = scmp.le.s32.totalorder 1, %s21
      %p380 = scmp.lt.s32.totalorder %s21, 9
      %p381 = pnand %p379, %p380
      %p382 = pneg %p381
      // Predicated region
      $region65: #{my_network_noskip_forward.3} parent=5 // pred_check
        _
      $region66: #{my_network_noskip_forward.3} parent=5 // pred_check_branch
        %384 = sbr.rel (%p381) target = $region68
      $region67: #{my_network_noskip_forward.3} parent=5 // pred_region
        %s385 = ssub.s32 %s21, 1
        %p386 = scmp.lt.s32.totalorder %s26, 7
        %s387 = scalar_select %p386, %s26, 7
        %s388 = smul.addr %s387, 2
        %s389 = scalar_lea.vmem %s0, %s388
        %p390 = pneg %p47
        %p391 = pneg %p44
        %p392 = pneg %p68
        %p393 = pneg %p65
        %p394 = pneg %p89
        %p395 = pneg %p86
        %p396 = pneg %p110
        %p397 = pneg %p107
        %p398 = pneg %p131
        %p399 = pneg %p128
        %p400 = pneg %p152
        %p401 = pneg %p149
        %p402 = pneg %p173
        %p403 = pneg %p170
        %p404 = pneg %p194
        %p405 = pneg %p191
        %p406 = pneg %p215
        %p407 = pneg %p212
        %p408 = pneg %p236
        %p409 = pneg %p233
        %p410 = pneg %p257
        %p411 = pneg %p254
        %p412 = pneg %p278
        %p413 = pneg %p275
        %p414 = pneg %p299
        %p415 = pneg %p296
        %p416 = pneg %p320
        %p417 = pneg %p317
        %p418 = scmp.lt.s32.totalorder %s26, 7
        %s419 = scalar_select %p418, %s26, 7
        %s420 = smul.addr %s419, 2
        %s421 = scalar_lea.vmem %s0, %s420
        %p422 = scmp.eq.s32.totalorder %s26, 0
        // Predicated region
        $region69: #{my_network_noskip_forward.3} parent=67 // pred_check
          %p423 = pneg %p422
        $region70: #{my_network_noskip_forward.3} parent=67 // pred_check_branch
          %425 = sbr.rel (%p423) target = $region72
        $region71: #{my_network_noskip_forward.3} parent=67 // pred_region
          %vm426 = vcmask 254976
          %427 = vst.msk [vmem:[#allocation2] sm:$0x3] %vm426, 0.0
          %428 = vst.msk [vmem:[#allocation3] sm:$0x3] %vm426, 0.0
          %429 = vst.msk [vmem:[#allocation4] sm:$0x3] %vm426, 0.0
          %vm430 = vcmask 41984
          %431 = vst.msk [vmem:[#allocation5] sm:$0x3] %vm430, 0.0
        $region72: #{my_network_noskip_forward.3} parent=67 // pred_fallthru
          _
        %v432 = vld [vmem:[%s1] sm:$0x3]
        %v433 = vstv %s26
        %vm434 = vcmp.lt.s32.totalorder %v433, %v432
        %v435 = vld [vmem:[#allocation2] sm:$0x3]
        %v436 = vld [vmem:[%s421] sm:$0x3]
        %v437 = vld [vmem:[%s2] sm:$0xff]
        %v438 = vld [vmem:[%s2 + $0x8] sm:$0xff]
        %v439 = vld [vmem:[%s2 + $0x10] sm:$0xff]
        %v440 = vld [vmem:[%s2 + $0x18] sm:$0xff]
        %vm441 = vcmask 261120
        %v443 = vsel %vm441, %v435, 0
        %445 = vmatprep.subr.mxu0 0.0
        %446 = vmatpush1.msra.mxu0 %v437
        %447 = vmatprep.subr.mxu0 0.0
        %448 = vmatpush1.msra.mxu0 %v438
        %449 = vmatprep.subr.mxu0 0.0
        %450 = vmatpush1.msra.mxu0 %v439
        %451 = vmatprep.subr.mxu0 0.0
        %452 = vmatpush1.msra.mxu0 %v440
        %453 = vmatprep.subr.mxu0 0.0
        %454 = vmatpush1.msra.mxu0 0.0
        %455 = vmatprep.subr.mxu0 0.0
        %456 = vmatpush1.msra.mxu0 0.0
        %457 = vmatprep.subr.mxu0 0.0
        %458 = vmatpush1.msra.mxu0 0.0
        %459 = vmatprep.subr.mxu0 0.0
        %460 = vmatpush1.msra.mxu0 0.0
        %461 = vmatprep.subr.mxu0 0.0
        %462 = vmatpush1.msra.mxu0 0.0
        %463 = vmatprep.subr.mxu0 0.0
        %464 = vmatpush1.msra.mxu0 0.0
        %465 = vmatprep.subr.mxu0 0.0
        %466 = vmatpush1.msra.mxu0 0.0
        %467 = vmatprep.subr.mxu0 0.0
        %468 = vmatpush1.msra.mxu0 0.0
        %469 = vmatprep.subr.mxu0 0.0
        %470 = vmatpush1.msra.mxu0 0.0
        %471 = vmatprep.subr.mxu0 0.0
        %472 = vmatpush1.msra.mxu0 0.0
        %473 = vmatprep.subr.mxu0 0.0
        %474 = vmatpush1.msra.mxu0 0.0
        %475 = vmatprep.subr.mxu0 0.0
        %476 = vmatpush1.msra.mxu0 0.0
        %477 = vmatprep.subr.mxu0 0.0
        %478 = vmatpush1.msra.mxu0 0.0
        %479 = vmatprep.subr.mxu0 0.0
        %480 = vmatpush1.msra.mxu0 0.0
        %481 = vmatprep.subr.mxu0 0.0
        %482 = vmatpush1.msra.mxu0 0.0
        %483 = vmatprep.subr.mxu0 0.0
        %484 = vmatpush1.msra.mxu0 0.0
        %485 = vmatprep.subr.mxu0 0.0
        %486 = vmatpush1.msra.mxu0 0.0
        %487 = vmatprep.subr.mxu0 0.0
        %488 = vmatpush1.msra.mxu0 0.0
        %489 = vmatprep.subr.mxu0 0.0
        %490 = vmatpush1.msra.mxu0 0.0
        %491 = vmatprep.subr.mxu0 0.0
        %492 = vmatpush1.msra.mxu0 0.0
        %493 = vmatprep.subr.mxu0 0.0
        %494 = vmatpush1.msra.mxu0 0.0
        %495 = vmatprep.subr.mxu0 0.0
        %496 = vmatpush1.msra.mxu0 0.0
        %497 = vmatprep.subr.mxu0 0.0
        %498 = vmatpush1.msra.mxu0 0.0
        %499 = vmatprep.subr.mxu0 0.0
        %500 = vmatpush1.msra.mxu0 0.0
        %501 = vmatprep.subr.mxu0 0.0
        %502 = vmatpush1.msra.mxu0 0.0
        %503 = vmatprep.subr.mxu0 0.0
        %504 = vmatpush1.msra.mxu0 0.0
        %505 = vmatprep.subr.mxu0 0.0
        %506 = vmatpush1.msra.mxu0 0.0
        %507 = vmatprep.subr.mxu0 0.0
        %508 = vmatpush1.msra.mxu0 0.0
        %509 = vmatprep.mubr.f32.mxu0 0.0
        %510 = vmatmul.mubr.f32.gmra.mrb[0].mxu0 %v443
        %v511 = vpop.f32.mrb[0].mxu0
        %v512 = vadd.f32 0.0, %v511
        %v513 = vpop.f32.mrb[0].mxu0
        %514 = vdwg.mxu0
        %v515 = vadd.f32 %v436, %v512
        %v516 = vtanh.pop %v515
        %v517 = vsel %vm434, 1, 0
        %518 = vset.pattern.permute.xlu0 0
        %519 = vperm.xlu0 %518, %v517
        %v520 = vpop.permute.xlu0 %519
        %vm521 = vcmp.eq.s32.totalorder %v520, 1
        %v522 = vsel %vm521, %v516, %v435
        %vm523 = vcmask 254976
        %524 = vst.msk [vmem:[#allocation2] sm:$0x3] %vm523, %v522
        %v525 = vsel %vm521, %v516, 0.0
        %v526 = vld [vmem:[%s6] sm:$0xff]
        %v527 = vld [vmem:[%s6 + $0x8] sm:$0xff]
        %v528 = vld [vmem:[%s6 + $0x10] sm:$0xff]
        %v529 = vld [vmem:[%s6 + $0x18] sm:$0xff]
        %v530 = vld [vmem:[%s7] sm:$0x1]
        %v532 = vlaneseq
        %v533 = vshrl.u32 %v532, 7
        %v534 = vsub.s32 0, %v533
        %v535 = vrot.slane %v530, %v534
        %v538 = vsel %vm441, %v525, 0
        %540 = vmatprep.subr.mxu0 0.0
        %541 = vmatpush1.msra.mxu0 %v526
        %542 = vmatprep.subr.mxu0 0.0
        %543 = vmatpush1.msra.mxu0 %v527
        %544 = vmatprep.subr.mxu0 0.0
        %545 = vmatpush1.msra.mxu0 %v528
        %546 = vmatprep.subr.mxu0 0.0
        %547 = vmatpush1.msra.mxu0 %v529
        %548 = vmatprep.subr.mxu0 0.0
        %549 = vmatpush1.msra.mxu0 0.0
        %550 = vmatprep.subr.mxu0 0.0
        %551 = vmatpush1.msra.mxu0 0.0
        %552 = vmatprep.subr.mxu0 0.0
        %553 = vmatpush1.msra.mxu0 0.0
        %554 = vmatprep.subr.mxu0 0.0
        %555 = vmatpush1.msra.mxu0 0.0
        %556 = vmatprep.subr.mxu0 0.0
        %557 = vmatpush1.msra.mxu0 0.0
        %558 = vmatprep.subr.mxu0 0.0
        %559 = vmatpush1.msra.mxu0 0.0
        %560 = vmatprep.subr.mxu0 0.0
        %561 = vmatpush1.msra.mxu0 0.0
        %562 = vmatprep.subr.mxu0 0.0
        %563 = vmatpush1.msra.mxu0 0.0
        %564 = vmatprep.subr.mxu0 0.0
        %565 = vmatpush1.msra.mxu0 0.0
        %566 = vmatprep.subr.mxu0 0.0
        %567 = vmatpush1.msra.mxu0 0.0
        %568 = vmatprep.subr.mxu0 0.0
        %569 = vmatpush1.msra.mxu0 0.0
        %570 = vmatprep.subr.mxu0 0.0
        %571 = vmatpush1.msra.mxu0 0.0
        %572 = vmatprep.subr.mxu0 0.0
        %573 = vmatpush1.msra.mxu0 0.0
        %574 = vmatprep.subr.mxu0 0.0
        %575 = vmatpush1.msra.mxu0 0.0
        %576 = vmatprep.subr.mxu0 0.0
        %577 = vmatpush1.msra.mxu0 0.0
        %578 = vmatprep.subr.mxu0 0.0
        %579 = vmatpush1.msra.mxu0 0.0
        %580 = vmatprep.subr.mxu0 0.0
        %581 = vmatpush1.msra.mxu0 0.0
        %582 = vmatprep.subr.mxu0 0.0
        %583 = vmatpush1.msra.mxu0 0.0
        %584 = vmatprep.subr.mxu0 0.0
        %585 = vmatpush1.msra.mxu0 0.0
        %586 = vmatprep.subr.mxu0 0.0
        %587 = vmatpush1.msra.mxu0 0.0
        %588 = vmatprep.subr.mxu0 0.0
        %589 = vmatpush1.msra.mxu0 0.0
        %590 = vmatprep.subr.mxu0 0.0
        %591 = vmatpush1.msra.mxu0 0.0
        %592 = vmatprep.subr.mxu0 0.0
        %593 = vmatpush1.msra.mxu0 0.0
        %594 = vmatprep.subr.mxu0 0.0
        %595 = vmatpush1.msra.mxu0 0.0
        %596 = vmatprep.subr.mxu0 0.0
        %597 = vmatpush1.msra.mxu0 0.0
        %598 = vmatprep.subr.mxu0 0.0
        %599 = vmatpush1.msra.mxu0 0.0
        %600 = vmatprep.subr.mxu0 0.0
        %601 = vmatpush1.msra.mxu0 0.0
        %602 = vmatprep.subr.mxu0 0.0
        %603 = vmatpush1.msra.mxu0 0.0
        %604 = vmatprep.mubr.f32.mxu0 0.0
        %605 = vmatmul.mubr.f32.gmra.mrb[0].mxu0 %v538
        %v606 = vpop.f32.mrb[0].mxu0
        %v607 = vadd.f32 %v535, %v606
        %v608 = vpop.f32.mrb[0].mxu0
        %609 = vdwg.mxu0
        %s610 = smul.u32 %s26, 2
        %s611 = scalar_lea.vmem %s12, %s610
        %vm612 = vcmask 17408
        %613 = vst.msk [vmem:[%s611] sm:$0x3] %vm612, %v607
        %v614 = vld [vmem:[#allocation3] sm:$0x3]
        %v615 = vld [vmem:[%s3] sm:$0xff]
        %v616 = vld [vmem:[%s3 + $0x8] sm:$0xff]
        %v617 = vld [vmem:[%s3 + $0x10] sm:$0xff]
        %v618 = vld [vmem:[%s3 + $0x18] sm:$0xff]
        %v619 = vld [vmem:[%s5] sm:$0xff]
        %v620 = vld [vmem:[%s5 + $0x8] sm:$0xff]
        %v621 = vld [vmem:[%s5 + $0x10] sm:$0xff]
        %v622 = vld [vmem:[%s5 + $0x18] sm:$0xff]
        %v624 = vsel %vm441, %v614, 0
        %626 = vmatprep.subr.mxu0 0.0
        %627 = vmatpush1.msra.mxu0 %v619
        %628 = vmatprep.subr.mxu0 0.0
        %629 = vmatpush1.msra.mxu0 %v620
        %630 = vmatprep.subr.mxu0 0.0
        %631 = vmatpush1.msra.mxu0 %v621
        %632 = vmatprep.subr.mxu0 0.0
        %633 = vmatpush1.msra.mxu0 %v622
        %634 = vmatprep.subr.mxu0 0.0
        %635 = vmatpush1.msra.mxu0 0.0
        %636 = vmatprep.subr.mxu0 0.0
        %637 = vmatpush1.msra.mxu0 0.0
        %638 = vmatprep.subr.mxu0 0.0
        %639 = vmatpush1.msra.mxu0 0.0
        %640 = vmatprep.subr.mxu0 0.0
        %641 = vmatpush1.msra.mxu0 0.0
        %642 = vmatprep.subr.mxu0 0.0
        %643 = vmatpush1.msra.mxu0 0.0
        %644 = vmatprep.subr.mxu0 0.0
        %645 = vmatpush1.msra.mxu0 0.0
        %646 = vmatprep.subr.mxu0 0.0
        %647 = vmatpush1.msra.mxu0 0.0
        %648 = vmatprep.subr.mxu0 0.0
        %649 = vmatpush1.msra.mxu0 0.0
        %650 = vmatprep.subr.mxu0 0.0
        %651 = vmatpush1.msra.mxu0 0.0
        %652 = vmatprep.subr.mxu0 0.0
        %653 = vmatpush1.msra.mxu0 0.0
        %654 = vmatprep.subr.mxu0 0.0
        %655 = vmatpush1.msra.mxu0 0.0
        %656 = vmatprep.subr.mxu0 0.0
        %657 = vmatpush1.msra.mxu0 0.0
        %658 = vmatprep.subr.mxu0 0.0
        %659 = vmatpush1.msra.mxu0 0.0
        %660 = vmatprep.subr.mxu0 0.0
        %661 = vmatpush1.msra.mxu0 0.0
        %662 = vmatprep.subr.mxu0 0.0
        %663 = vmatpush1.msra.mxu0 0.0
        %664 = vmatprep.subr.mxu0 0.0
        %665 = vmatpush1.msra.mxu0 0.0
        %666 = vmatprep.subr.mxu0 0.0
        %667 = vmatpush1.msra.mxu0 0.0
        %668 = vmatprep.subr.mxu0 0.0
        %669 = vmatpush1.msra.mxu0 0.0
        %670 = vmatprep.subr.mxu0 0.0
        %671 = vmatpush1.msra.mxu0 0.0
        %672 = vmatprep.subr.mxu0 0.0
        %673 = vmatpush1.msra.mxu0 0.0
        %674 = vmatprep.subr.mxu0 0.0
        %675 = vmatpush1.msra.mxu0 0.0
        %676 = vmatprep.subr.mxu0 0.0
        %677 = vmatpush1.msra.mxu0 0.0
        %678 = vmatprep.subr.mxu0 0.0
        %679 = vmatpush1.msra.mxu0 0.0
        %680 = vmatprep.subr.mxu0 0.0
        %681 = vmatpush1.msra.mxu0 0.0
        %682 = vmatprep.subr.mxu0 0.0
        %683 = vmatpush1.msra.mxu0 0.0
        %684 = vmatprep.subr.mxu0 0.0
        %685 = vmatpush1.msra.mxu0 0.0
        %686 = vmatprep.subr.mxu0 0.0
        %687 = vmatpush1.msra.mxu0 0.0
        %688 = vmatprep.subr.mxu0 0.0
        %689 = vmatpush1.msra.mxu0 0.0
        %690 = vmatprep.mubr.f32.mxu0 0.0
        %691 = vmatmul.mubr.f32.gmra.mrb[0].mxu0 %v624
        %v692 = vpop.f32.mrb[0].mxu0
        %v693 = vadd.f32 0.0, %v692
        %v694 = vpop.f32.mrb[0].mxu0
        %695 = vdwg.mxu0
        %696 = vmatprep.subr.mxu0 0.0
        %697 = vmatpush1.msra.mxu0 %v615
        %698 = vmatprep.subr.mxu0 0.0
        %699 = vmatpush1.msra.mxu0 %v616
        %700 = vmatprep.subr.mxu0 0.0
        %701 = vmatpush1.msra.mxu0 %v617
        %702 = vmatprep.subr.mxu0 0.0
        %703 = vmatpush1.msra.mxu0 %v618
        %704 = vmatprep.subr.mxu0 0.0
        %705 = vmatpush1.msra.mxu0 0.0
        %706 = vmatprep.subr.mxu0 0.0
        %707 = vmatpush1.msra.mxu0 0.0
        %708 = vmatprep.subr.mxu0 0.0
        %709 = vmatpush1.msra.mxu0 0.0
        %710 = vmatprep.subr.mxu0 0.0
        %711 = vmatpush1.msra.mxu0 0.0
        %712 = vmatprep.subr.mxu0 0.0
        %713 = vmatpush1.msra.mxu0 0.0
        %714 = vmatprep.subr.mxu0 0.0
        %715 = vmatpush1.msra.mxu0 0.0
        %716 = vmatprep.subr.mxu0 0.0
        %717 = vmatpush1.msra.mxu0 0.0
        %718 = vmatprep.subr.mxu0 0.0
        %719 = vmatpush1.msra.mxu0 0.0
        %720 = vmatprep.subr.mxu0 0.0
        %721 = vmatpush1.msra.mxu0 0.0
        %722 = vmatprep.subr.mxu0 0.0
        %723 = vmatpush1.msra.mxu0 0.0
        %724 = vmatprep.subr.mxu0 0.0
        %725 = vmatpush1.msra.mxu0 0.0
        %726 = vmatprep.subr.mxu0 0.0
        %727 = vmatpush1.msra.mxu0 0.0
        %728 = vmatprep.subr.mxu0 0.0
        %729 = vmatpush1.msra.mxu0 0.0
        %730 = vmatprep.subr.mxu0 0.0
        %731 = vmatpush1.msra.mxu0 0.0
        %732 = vmatprep.subr.mxu0 0.0
        %733 = vmatpush1.msra.mxu0 0.0
        %734 = vmatprep.subr.mxu0 0.0
        %735 = vmatpush1.msra.mxu0 0.0
        %736 = vmatprep.subr.mxu0 0.0
        %737 = vmatpush1.msra.mxu0 0.0
        %738 = vmatprep.subr.mxu0 0.0
        %739 = vmatpush1.msra.mxu0 0.0
        %740 = vmatprep.subr.mxu0 0.0
        %741 = vmatpush1.msra.mxu0 0.0
        %742 = vmatprep.subr.mxu0 0.0
        %743 = vmatpush1.msra.mxu0 0.0
        %744 = vmatprep.subr.mxu0 0.0
        %745 = vmatpush1.msra.mxu0 0.0
        %746 = vmatprep.subr.mxu0 0.0
        %747 = vmatpush1.msra.mxu0 0.0
        %748 = vmatprep.subr.mxu0 0.0
        %749 = vmatpush1.msra.mxu0 0.0
        %750 = vmatprep.subr.mxu0 0.0
        %751 = vmatpush1.msra.mxu0 0.0
        %752 = vmatprep.subr.mxu0 0.0
        %753 = vmatpush1.msra.mxu0 0.0
        %754 = vmatprep.subr.mxu0 0.0
        %755 = vmatpush1.msra.mxu0 0.0
        %756 = vmatprep.subr.mxu0 0.0
        %757 = vmatpush1.msra.mxu0 0.0
        %758 = vmatprep.subr.mxu0 0.0
        %759 = vmatpush1.msra.mxu0 0.0
        %760 = vmatprep.mubr.f32.mxu0 0.0
        %761 = vmatmul.mubr.f32.gmra.mrb[0].mxu0 %v538
        %v762 = vpop.f32.mrb[0].mxu0
        %v763 = vadd.f32 %v693, %v762
        %v764 = vpop.f32.mrb[0].mxu0
        %765 = vdwg.mxu0
        %v766 = vld [vmem:[%s4] sm:$0x1]
        %v768 = vlaneseq
        %v769 = vshrl.u32 %v768, 7
        %v770 = vsub.s32 0, %v769
        %v771 = vrot.slane %v766, %v770
        %v773 = vadd.f32 %v763, %v771
        %v774 = vtanh.pop %v773
        %v775 = vsel %vm521, %v774, %v614
        %776 = vst.msk [vmem:[#allocation3] sm:$0x3] %vm523, %v775
        %v777 = vsel %vm521, %v774, 0.0
        %vm778 = vcmp.eq.s32.totalorder %v432, %v433
        %v779 = vld [vmem:[#allocation4] sm:$0x3]
        %v780 = vsel %vm778, 1, 0
        %781 = vset.pattern.permute.xlu0 0
        %782 = vperm.xlu0 %781, %v780
        %v783 = vpop.permute.xlu0 %782
        %vm784 = vcmp.eq.s32.totalorder %v783, 1
        %v785 = vsel %vm784, %v777, %v779
        %786 = vst.msk [vmem:[#allocation4] sm:$0x3] %vm523, %v785
        %p787 = scmp.eq.s32.totalorder %s26, 7
        // Predicated region
        $region73: #{my_network_noskip_forward.3} parent=67 // pred_check
          %p788 = pneg %p787
        $region74: #{my_network_noskip_forward.3} parent=67 // pred_check_branch
          %790 = sbr.rel (%p788) target = $region76
        $region75: #{my_network_noskip_forward.3} parent=67 // pred_region
          %v791 = vld [vmem:[#allocation4] sm:$0x3]
          %v792 = vld [vmem:[%s8] sm:$0xff]
          %v793 = vld [vmem:[%s8 + $0x8] sm:$0xff]
          %v794 = vld [vmem:[%s8 + $0x10] sm:$0xff]
          %v795 = vld [vmem:[%s8 + $0x18] sm:$0xff]
          %v796 = vld [vmem:[%s9] sm:$0x1]
          %v798 = vlaneseq
          %v799 = vshrl.u32 %v798, 7
          %v800 = vsub.s32 0, %v799
          %v801 = vrot.slane %v796, %v800
          %v804 = vsel %vm441, %v791, 0
          %806 = vmatprep.subr.mxu0 0.0
          %807 = vmatpush1.msra.mxu0 %v792
          %808 = vmatprep.subr.mxu0 0.0
          %809 = vmatpush1.msra.mxu0 %v793
          %810 = vmatprep.subr.mxu0 0.0
          %811 = vmatpush1.msra.mxu0 %v794
          %812 = vmatprep.subr.mxu0 0.0
          %813 = vmatpush1.msra.mxu0 %v795
          %814 = vmatprep.subr.mxu0 0.0
          %815 = vmatpush1.msra.mxu0 0.0
          %816 = vmatprep.subr.mxu0 0.0
          %817 = vmatpush1.msra.mxu0 0.0
          %818 = vmatprep.subr.mxu0 0.0
          %819 = vmatpush1.msra.mxu0 0.0
          %820 = vmatprep.subr.mxu0 0.0
          %821 = vmatpush1.msra.mxu0 0.0
          %822 = vmatprep.subr.mxu0 0.0
          %823 = vmatpush1.msra.mxu0 0.0
          %824 = vmatprep.subr.mxu0 0.0
          %825 = vmatpush1.msra.mxu0 0.0
          %826 = vmatprep.subr.mxu0 0.0
          %827 = vmatpush1.msra.mxu0 0.0
          %828 = vmatprep.subr.mxu0 0.0
          %829 = vmatpush1.msra.mxu0 0.0
          %830 = vmatprep.subr.mxu0 0.0
          %831 = vmatpush1.msra.mxu0 0.0
          %832 = vmatprep.subr.mxu0 0.0
          %833 = vmatpush1.msra.mxu0 0.0
          %834 = vmatprep.subr.mxu0 0.0
          %835 = vmatpush1.msra.mxu0 0.0
          %836 = vmatprep.subr.mxu0 0.0
          %837 = vmatpush1.msra.mxu0 0.0
          %838 = vmatprep.subr.mxu0 0.0
          %839 = vmatpush1.msra.mxu0 0.0
          %840 = vmatprep.subr.mxu0 0.0
          %841 = vmatpush1.msra.mxu0 0.0
          %842 = vmatprep.subr.mxu0 0.0
          %843 = vmatpush1.msra.mxu0 0.0
          %844 = vmatprep.subr.mxu0 0.0
          %845 = vmatpush1.msra.mxu0 0.0
          %846 = vmatprep.subr.mxu0 0.0
          %847 = vmatpush1.msra.mxu0 0.0
          %848 = vmatprep.subr.mxu0 0.0
          %849 = vmatpush1.msra.mxu0 0.0
          %850 = vmatprep.subr.mxu0 0.0
          %851 = vmatpush1.msra.mxu0 0.0
          %852 = vmatprep.subr.mxu0 0.0
          %853 = vmatpush1.msra.mxu0 0.0
          %854 = vmatprep.subr.mxu0 0.0
          %855 = vmatpush1.msra.mxu0 0.0
          %856 = vmatprep.subr.mxu0 0.0
          %857 = vmatpush1.msra.mxu0 0.0
          %858 = vmatprep.subr.mxu0 0.0
          %859 = vmatpush1.msra.mxu0 0.0
          %860 = vmatprep.subr.mxu0 0.0
          %861 = vmatpush1.msra.mxu0 0.0
          %862 = vmatprep.subr.mxu0 0.0
          %863 = vmatpush1.msra.mxu0 0.0
          %864 = vmatprep.subr.mxu0 0.0
          %865 = vmatpush1.msra.mxu0 0.0
          %866 = vmatprep.subr.mxu0 0.0
          %867 = vmatpush1.msra.mxu0 0.0
          %868 = vmatprep.subr.mxu0 0.0
          %869 = vmatpush1.msra.mxu0 0.0
          %870 = vmatprep.mubr.f32.mxu0 0.0
          %871 = vmatmul.mubr.f32.gmra.mrb[0].mxu0 %v804
          %v872 = vpop.f32.mrb[0].mxu0
          %v873 = vadd.f32 %v801, %v872
          %v874 = vpop.f32.mrb[0].mxu0
          %875 = vdwg.mxu0
          %v876 = vmax.f32 %v873, 0.0
          %v877 = vld [vmem:[%s10] sm:$0xff]
          %v878 = vld [vmem:[%s10 + $0x8] sm:$0xff]
          %v879 = vld [vmem:[%s10 + $0x10] sm:$0xff]
          %v880 = vld [vmem:[%s10 + $0x18] sm:$0xff]
          %v881 = vld [vmem:[%s11] sm:$0x1]
          %v883 = vlaneseq
          %v884 = vshrl.u32 %v883, 7
          %v885 = vsub.s32 0, %v884
          %v886 = vrot.slane %v881, %v885
          %v889 = vsel %vm441, %v876, 0
          %891 = vmatprep.subr.mxu0 0.0
          %892 = vmatpush1.msra.mxu0 %v877
          %893 = vmatprep.subr.mxu0 0.0
          %894 = vmatpush1.msra.mxu0 %v878
          %895 = vmatprep.subr.mxu0 0.0
          %896 = vmatpush1.msra.mxu0 %v879
          %897 = vmatprep.subr.mxu0 0.0
          %898 = vmatpush1.msra.mxu0 %v880
          %899 = vmatprep.subr.mxu0 0.0
          %900 = vmatpush1.msra.mxu0 0.0
          %901 = vmatprep.subr.mxu0 0.0
          %902 = vmatpush1.msra.mxu0 0.0
          %903 = vmatprep.subr.mxu0 0.0
          %904 = vmatpush1.msra.mxu0 0.0
          %905 = vmatprep.subr.mxu0 0.0
          %906 = vmatpush1.msra.mxu0 0.0
          %907 = vmatprep.subr.mxu0 0.0
          %908 = vmatpush1.msra.mxu0 0.0
          %909 = vmatprep.subr.mxu0 0.0
          %910 = vmatpush1.msra.mxu0 0.0
          %911 = vmatprep.subr.mxu0 0.0
          %912 = vmatpush1.msra.mxu0 0.0
          %913 = vmatprep.subr.mxu0 0.0
          %914 = vmatpush1.msra.mxu0 0.0
          %915 = vmatprep.subr.mxu0 0.0
          %916 = vmatpush1.msra.mxu0 0.0
          %917 = vmatprep.subr.mxu0 0.0
          %918 = vmatpush1.msra.mxu0 0.0
          %919 = vmatprep.subr.mxu0 0.0
          %920 = vmatpush1.msra.mxu0 0.0
          %921 = vmatprep.subr.mxu0 0.0
          %922 = vmatpush1.msra.mxu0 0.0
          %923 = vmatprep.subr.mxu0 0.0
          %924 = vmatpush1.msra.mxu0 0.0
          %925 = vmatprep.subr.mxu0 0.0
          %926 = vmatpush1.msra.mxu0 0.0
          %927 = vmatprep.subr.mxu0 0.0
          %928 = vmatpush1.msra.mxu0 0.0
          %929 = vmatprep.subr.mxu0 0.0
          %930 = vmatpush1.msra.mxu0 0.0
          %931 = vmatprep.subr.mxu0 0.0
          %932 = vmatpush1.msra.mxu0 0.0
          %933 = vmatprep.subr.mxu0 0.0
          %934 = vmatpush1.msra.mxu0 0.0
          %935 = vmatprep.subr.mxu0 0.0
          %936 = vmatpush1.msra.mxu0 0.0
          %937 = vmatprep.subr.mxu0 0.0
          %938 = vmatpush1.msra.mxu0 0.0
          %939 = vmatprep.subr.mxu0 0.0
          %940 = vmatpush1.msra.mxu0 0.0
          %941 = vmatprep.subr.mxu0 0.0
          %942 = vmatpush1.msra.mxu0 0.0
          %943 = vmatprep.subr.mxu0 0.0
          %944 = vmatpush1.msra.mxu0 0.0
          %945 = vmatprep.subr.mxu0 0.0
          %946 = vmatpush1.msra.mxu0 0.0
          %947 = vmatprep.subr.mxu0 0.0
          %948 = vmatpush1.msra.mxu0 0.0
          %949 = vmatprep.subr.mxu0 0.0
          %950 = vmatpush1.msra.mxu0 0.0
          %951 = vmatprep.subr.mxu0 0.0
          %952 = vmatpush1.msra.mxu0 0.0
          %953 = vmatprep.subr.mxu0 0.0
          %954 = vmatpush1.msra.mxu0 0.0
          %955 = vmatprep.mubr.f32.mxu0 0.0
          %956 = vmatmul.mubr.f32.gmra.mrb[0].mxu0 %v889
          %v957 = vpop.f32.mrb[0].mxu0
          %v958 = vadd.f32 %v886, %v957
          %v959 = vpop.f32.mrb[0].mxu0
          %960 = vdwg.mxu0
          %vm961 = vcmask 41984
          %962 = vst.msk [vmem:[#allocation5] sm:$0x3] %vm961, %v958
        $region76: #{my_network_noskip_forward.3} parent=67 // pred_fallthru
          _
        // Predicated region
        $region77: #{my_network_noskip_forward.3} parent=67 // pred_check
          %p963 = pneg %p296
        $region78: #{my_network_noskip_forward.3} parent=67 // pred_check_branch
          %965 = sbr.rel (%p963) target = $region80
        $region79: #{my_network_noskip_forward.3} parent=67 // pred_region
          _
        $region80: #{my_network_noskip_forward.3} parent=67 // pred_fallthru
          _
        // Predicated region
        $region81: #{my_network_noskip_forward.3} parent=67 // pred_check
          %p966 = pneg %p317
        $region82: #{my_network_noskip_forward.3} parent=67 // pred_check_branch
          %968 = sbr.rel (%p966) target = $region84
        $region83: #{my_network_noskip_forward.3} parent=67 // pred_region
          %s970 = ssub.s32 32, 32
          %971 = vsyncadd [#allocation6], %s970
          %s973 = sshll.u32 [#allocation5], 4
          %s974 = int_to_ptr.vmem [resolvable:$true] %s973
          %976 = dma.vmem_to_hbm [thread:$0]  %s974, 32, %s13, [#allocation6]
        $region84: #{my_network_noskip_forward.3} parent=67 // pred_fallthru
          _
        // Predicated region
        $region85: #{my_network_noskip_forward.3} parent=67 // pred_check
          %p977 = pneg %p296
        $region86: #{my_network_noskip_forward.3} parent=67 // pred_check_branch
          %979 = sbr.rel (%p977) target = $region88
        $region87: #{my_network_noskip_forward.3} parent=67 // pred_region
          _
        $region88: #{my_network_noskip_forward.3} parent=67 // pred_fallthru
          _
        // Predicated region
        $region89: #{my_network_noskip_forward.3} parent=67 // pred_check
          %p980 = pneg %p317
        $region90: #{my_network_noskip_forward.3} parent=67 // pred_check_branch
          %982 = sbr.rel (%p980) target = $region92
        $region91: #{my_network_noskip_forward.3} parent=67 // pred_region
          %983 = dma.done [#allocation6], 32
        $region92: #{my_network_noskip_forward.3} parent=67 // pred_fallthru
          _
      $region68: #{my_network_noskip_forward.3} parent=5 // pred_fallthru
        _
      %p984 = scmp.le.s32.totalorder 2, %s21
      // Predicated region
      $region93: #{my_network_noskip_forward.3} parent=5 // pred_check
        %p985 = pneg %p984
      $region94: #{my_network_noskip_forward.3} parent=5 // pred_check_branch
        %987 = sbr.rel (%p985) target = $region96
      $region95: #{my_network_noskip_forward.3} parent=5 // pred_region
        %s988 = ssub.s32 %s21, 2
      $region96: #{my_network_noskip_forward.3} parent=5 // pred_fallthru
        _
    $region6: #{my_network_noskip_forward.3} parent=1 // loop_footer
      %s25 = sadd.s32 1, %s21
    $region7: #{my_network_noskip_forward.3} parent=1 // loop_footer_branch
      %20 = sbr.rel target = $region3
    $region8: #{my_network_noskip_forward.3} parent=1 // loop_exit
      _
    %989 = vsyncpa [#allocation6], 1
    %s990 = scalar_lea.sflag [#allocation6], 1
    %991 = vsyncpa %s990, 1

</llo_original>
